<compile_context>
chip_gen: v7x
topology: tpu7x:2x2x1
jax: 0.10.0
libtpu: 0.0.40
codegen_flags: <defaults>
</compile_context>

<pallas_src>
import jax
import jax.numpy as jnp
from jax import lax
from jax.experimental import pallas as pl
from jax.experimental.pallas import tpu as pltpu

LANE = 128        # interior lane offset inside the halo scratch (128-aligned)
ROW_ALIGN = 16    # interior row offset: one native (16,128) bf16 tile / two f32 tiles


def fold_bn(gamma, beta, mean, var, eps=1e-5):
    scale = gamma / jnp.sqrt(var + eps)
    bias = beta - mean * scale
    return scale, bias


def _pack_banded_rhs(w_hwio, scale, w_sp, d, matmul_dtype):
    """Fold the BN scale into the conv weight and expand it into three banded
    matrices R_kh of shape ((W+2d)*Cin, W*Cout).

    With activations row-flattened to (H, W*C), a 3x3 (dilated) conv becomes
        out[h, :] = sum_kh  xpad_flat[h + kh*d, :] @ R_kh
    i.e. the contraction axis keeps its natural size and the matmul output is
    lane-dense in exactly the layout of the next stage (no im2col slab and no
    per-tap 128-lane padding)."""
    _, _, cin, cout = w_hwio.shape
    w = (w_hwio * scale).astype(jnp.float32)            # fold BN scale (on Cout)
    eye = jnp.eye(w_sp, dtype=jnp.float32)
    wide = (w_sp + 2 * d) * cin
    mats = []
    for kh in range(3):
        r = jnp.zeros((wide, w_sp * cout), jnp.float32)
        for kw in range(3):
            blk = jnp.kron(eye, w[kh, kw])               # block-diag (W*cin, W*cout)
            r = r.at[kw * d * cin: kw * d * cin + w_sp * cin, :].add(blk)
        mats.append(r)
    return jnp.stack(mats).astype(matmul_dtype)          # (3, (W+2d)*cin, W*cout)


# ----------------------------------------------------------------------------
# Fused BasicBlock kernel (per batch element):
#   conv3x3+BN1+ReLU -> aligned VMEM halo scratch -> conv3x3+BN2+residual+ReLU
# ----------------------------------------------------------------------------
def _make_basic_block_kernel(H, W, cin, cmid, cout, d, mx_dtype,
                             separate_residual):
    ROW0 = ROW_ALIGN        # interior rows start tile-aligned
    COL0 = LANE             # interior lanes start 128-aligned

    def kernel(x_ref, r1_ref, b1_ref, r2_ref, b2_ref, *rest):
        if separate_residual:
            res_ref, o_ref, xpad_ref, midpad_ref = rest
        else:
            o_ref, xpad_ref, midpad_ref = rest

        # Zero the halo scratches ONCE: they persist across grid steps, the
        # interiors are fully overwritten every step, the halos never are.
        @pl.when(pl.program_id(0) == 0)
        def _():
            xpad_ref[...] = jnp.zeros_like(xpad_ref)
            midpad_ref[...] = jnp.zeros_like(midpad_ref)

        # Lane/sublane-ALIGNED interior write (ROW0 % 16 == 0, COL0 % 128 == 0).
        # The halo offsets are absorbed on the (cheaper) load side below.
        xpad_ref[ROW0:ROW0 + H, COL0:COL0 + W * cin] = x_ref[0].astype(mx_dtype)

        def conv3x3(src_ref, c_src, r_ref, b_ref):
            wide = (W + 2 * d) * c_src
            acc = None
            for kh in range(3):               # unrolled at trace time
                lhs = src_ref[ROW0 - d + kh * d: ROW0 - d + kh * d + H,
                              COL0 - d * c_src: COL0 - d * c_src + wide]
                p = jnp.dot(lhs, r_ref[kh], preferred_element_type=jnp.float32)
                acc = p if acc is None else acc + p
            return acc + b_ref[...]           # f32 (H, W*c_dst)

        # conv1 (BN1 folded) + bias + ReLU -> aligned interior of midpad
        y1 = jnp.maximum(conv3x3(xpad_ref, cin, r1_ref, b1_ref), 0.0)
        midpad_ref[ROW0:ROW0 + H, COL0:COL0 + W * cmid] = y1.astype(mx_dtype)

        # conv2 (BN2 folded) + bias + residual + ReLU (all f32 epilogue)
        y2 = conv3x3(midpad_ref, cmid, r2_ref, b2_ref)
        res = res_ref[0] if separate_residual else x_ref[0]
        y2 = jnp.maximum(y2 + res.astype(jnp.float32), 0.0)
        o_ref[...] = y2[None].astype(o_ref.dtype)

    return kernel


def basic_block_fused(x_flat, r1, b1, r2, b2, *, dilation, residual_flat,
                      cin, cmid, cout, matmul_dtype):
    N, H, WC = x_flat.shape
    W = WC // cin
    d = dilation
    sep_res = residual_flat is not None
    rows = ROW_ALIGN + H + d
    def scratch_cols(c):
        return LANE + (W + d) * c

    kernel = _make_basic_block_kernel(H, W, cin, cmid, cout, d, matmul_dtype,
                                      sep_res)

    in_specs = [
        pl.BlockSpec((1, H, W * cin), lambda n: (n, 0, 0)),   # lane-dense x tile
        pl.BlockSpec(r1.shape, lambda n: (0, 0, 0)),
        pl.BlockSpec(b1.shape, lambda n: (0, 0)),
        pl.BlockSpec(r2.shape, lambda n: (0, 0, 0)),
        pl.BlockSpec(b2.shape, lambda n: (0, 0)),
    ]
    args = [x_flat, r1, b1, r2, b2]
    if sep_res:
        in_specs.append(pl.BlockSpec((1, H, W * cout), lambda n: (n, 0, 0)))
        args.append(residual_flat)

    # TODO(synk): for large feature maps, add a second "parallel" grid axis
    # tiling H into row bands with a 2*dilation halo so prefetch/writeback can
    # overlap compute and both v7x TensorCores get several steps; size the band
    # for v7x's 64 MiB VMEM (32 MiB scoped) separately from v5e/v6e.
    return pl.pallas_call(
        kernel,
        out_shape=jax.ShapeDtypeStruct((N, H, W * cout), x_flat.dtype),
        grid=(N,),
        in_specs=in_specs,
        out_specs=pl.BlockSpec((1, H, W * cout), lambda n: (n, 0, 0)),
        scratch_shapes=[
            pltpu.VMEM((rows, scratch_cols(cin)), matmul_dtype),   # halo'd input
            pltpu.VMEM((rows, scratch_cols(cmid)), matmul_dtype),  # halo'd conv1 out
        ],
        compiler_params=pltpu.CompilerParams(
            dimension_semantics=("parallel",),
            vmem_limit_bytes=32 * 1024 * 1024,   # explicit (v5e default is 16 MiB)
        ),
    )(*args)


# ----------------------------------------------------------------------------
# BasicBlock forward (NCHW in / NCHW out, matching the PyTorch module).
# ----------------------------------------------------------------------------
def basic_block_forward(x_nchw, params, *, dilation=1, residual=None,
                        matmul_dtype=jnp.bfloat16):
    N, Cin, H, W = x_nchw.shape
    Cmid = params["w1"].shape[3]
    Cout = params["w2"].shape[3]
    assert params["w1"].shape == (3, 3, Cin, Cmid)
    assert params["w2"].shape == (3, 3, Cmid, Cout)
    if residual is None:
        assert Cout == Cin, "identity residual requires planes == inplanes"
    # TODO(synk): stride > 1 on conv1 (and the downsample residual path) is not
    # implemented; this fuses the default stride=1 BasicBlock configuration.

    # Lane-dense HBM layout: NCHW -> NHWC -> (N, H, W*C) so every activation /
    # residual load and every output store is a full-width op (W*C = 128 here).
    def flatten(t):
        n, c, h, w = t.shape
        return jnp.transpose(t, (0, 2, 3, 1)).reshape(n, h, w * c)

    x_flat = flatten(x_nchw)
    res_flat = None if residual is None else flatten(residual)
    if res_flat is not None:
        assert res_flat.shape == (N, H, W * Cout)

    s1, b1 = fold_bn(params["bn1_gamma"], params["bn1_beta"],
                     params["bn1_mean"], params["bn1_var"])
    s2, b2 = fold_bn(params["bn2_gamma"], params["bn2_beta"],
                     params["bn2_mean"], params["bn2_var"])

    r1 = _pack_banded_rhs(params["w1"], s1, W, dilation, matmul_dtype)
    r2 = _pack_banded_rhs(params["w2"], s2, W, dilation, matmul_dtype)
    b1f = jnp.tile(b1, W).reshape(1, W * Cmid).astype(jnp.float32)
    b2f = jnp.tile(b2, W).reshape(1, W * Cout).astype(jnp.float32)

    out_flat = basic_block_fused(
        x_flat, r1, b1f, r2, b2f, dilation=dilation, residual_flat=res_flat,
        cin=Cin, cmid=Cmid, cout=Cout, matmul_dtype=matmul_dtype)
    out = out_flat.reshape(N, H, W, Cout)
    return jnp.transpose(out, (0, 3, 1, 2))   # NHWC -> NCHW


# ----------------------------------------------------------------------------
# Pure-JAX reference (for correctness check).
# ----------------------------------------------------------------------------
def reference_forward(x_nchw, params, *, dilation=1):
    def conv(x, w_hwio):
        w_oihw = jnp.transpose(w_hwio, (3, 2, 0, 1))
        return lax.conv_general_dilated(
            x, w_oihw, window_strides=(1, 1),
            padding=((dilation, dilation), (dilation, dilation)),
            rhs_dilation=(dilation, dilation),
            dimension_numbers=("NCHW", "OIHW", "NCHW"))

    def bn(x, g, b, m, v, eps=1e-5):
        g = g[None, :, None, None]
        b = b[None, :, None, None]
        m = m[None, :, None, None]
        v = v[None, :, None, None]
        return (x - m) / jnp.sqrt(v + eps) * g + b

    res = x_nchw
    out = conv(x_nchw, params["w1"])
    out = bn(out, params["bn1_gamma"], params["bn1_beta"],
             params["bn1_mean"], params["bn1_var"])
    out = jnp.maximum(out, 0.0)
    out = conv(out, params["w2"])
    out = bn(out, params["bn2_gamma"], params["bn2_beta"],
             params["bn2_mean"], params["bn2_var"])
    out = out + res
    out = jnp.maximum(out, 0.0)
    return out


# ----------------------------------------------------------------------------
# Main
# ----------------------------------------------------------------------------
if __name__ == "__main__":
    key = jax.random.PRNGKey(0)
    N, C, H, W = 2, 8, 16, 16      # inplanes == planes == 8, stride=1, dilation=1
    inplanes = planes = C

    ks = jax.random.split(key, 11)
    x = jax.random.normal(ks[0], (N, C, H, W), jnp.float32)

    params = {
        # conv weights in HWIO layout: (3, 3, Cin, Cout)
        "w1": 0.1 * jax.random.normal(ks[1], (3, 3, inplanes, planes), jnp.float32),
        "w2": 0.1 * jax.random.normal(ks[2], (3, 3, planes, planes), jnp.float32),
        "bn1_gamma": 1.0 + 0.1 * jax.random.normal(ks[3], (planes,), jnp.float32),
        "bn1_beta": 0.1 * jax.random.normal(ks[4], (planes,), jnp.float32),
        "bn1_mean": 0.1 * jax.random.normal(ks[5], (planes,), jnp.float32),
        "bn1_var": jnp.abs(jax.random.normal(ks[6], (planes,), jnp.float32)) + 0.5,
        "bn2_gamma": 1.0 + 0.1 * jax.random.normal(ks[7], (planes,), jnp.float32),
        "bn2_beta": 0.1 * jax.random.normal(ks[8], (planes,), jnp.float32),
        "bn2_mean": 0.1 * jax.random.normal(ks[9], (planes,), jnp.float32),
        "bn2_var": jnp.abs(jax.random.normal(ks[10], (planes,), jnp.float32)) + 0.5,
    }

    ref = jax.block_until_ready(reference_forward(x, params))

    # f32 MXU path: tight check against the XLA conv/BN/ReLU reference.
    out_f32 = jax.block_until_ready(
        basic_block_forward(x, params, matmul_dtype=jnp.float32))
    assert out_f32.shape == (N, C, H, W), out_f32.shape
    assert jnp.allclose(out_f32, ref, atol=2e-3, rtol=2e-3), (
        float(jnp.max(jnp.abs(out_f32 - ref))))

    # bf16 MXU path (default): f32 accumulation and f32 epilogue, so only small
    # drift vs the f32 reference is expected.
    out_bf16 = jax.block_until_ready(basic_block_forward(x, params))
    assert out_bf16.shape == (N, C, H, W), out_bf16.shape
    assert jnp.allclose(out_bf16, ref, atol=5e-2, rtol=5e-2), (
        float(jnp.max(jnp.abs(out_bf16 - ref))))

    print("KERNEL_OK")
</pallas_src>

<mosaic_0001>
module attributes {stable_mosaic.version = 11 : i64} {
  func.func @kernel(%arg0: i32, %arg1: memref<1x16x128xf32, #tpu.memory_space<vmem>>, %arg2: memref<3x144x128xf32, #tpu.memory_space<vmem>>, %arg3: memref<1x128xf32, #tpu.memory_space<vmem>>, %arg4: memref<3x144x128xf32, #tpu.memory_space<vmem>>, %arg5: memref<1x128xf32, #tpu.memory_space<vmem>>, %arg6: memref<1x16x128xf32, #tpu.memory_space<vmem>>, %arg7: memref<33x264xf32, #tpu.memory_space<vmem>>, %arg8: memref<33x264xf32, #tpu.memory_space<vmem>>) attributes {dimension_semantics = [#tpu.dimension_semantics<parallel>], iteration_bounds = array<i64: 2>, scalar_prefetch = 0 : i64, scratch_operands = 2 : i64, tpu.core_type = #tpu.core_type<tc>, window_params = [{transform_indices = @transform_0, window_bounds = array<i64: 1, 16, 128>}, {pipeline_mode = #tpu.pipeline_mode<synchronous>, transform_indices = @transform_1, window_bounds = array<i64: 3, 144, 128>}, {pipeline_mode = #tpu.pipeline_mode<synchronous>, transform_indices = @transform_2, window_bounds = array<i64: 1, 128>}, {pipeline_mode = #tpu.pipeline_mode<synchronous>, transform_indices = @transform_3, window_bounds = array<i64: 3, 144, 128>}, {pipeline_mode = #tpu.pipeline_mode<synchronous>, transform_indices = @transform_4, window_bounds = array<i64: 1, 128>}, {transform_indices = @transform_5, window_bounds = array<i64: 1, 16, 128>}]} {
    %c0_i32 = arith.constant 0 : i32
    %0 = arith.cmpi eq, %arg0, %c0_i32 : i32
    %1 = arith.extui %0 : i1 to i32
    %c0_i32_0 = arith.constant 0 : i32
    %2 = arith.cmpi ne, %1, %c0_i32_0 : i32
    scf.if %2 {
      %cst_47 = arith.constant 0.000000e+00 : f32
      %50 = vector.broadcast %cst_47 : f32 to vector<33x264xf32>
      %c0_48 = arith.constant 0 : index
      %c0_49 = arith.constant 0 : index
      %51 = vector.load %arg7[%c0_48, %c0_49] : memref<33x264xf32, #tpu.memory_space<vmem>>, vector<33x264xf32>
      tpu.vector_store %arg7[%c0_48, %c0_49], %50 {strides = array<i32>} : memref<33x264xf32, #tpu.memory_space<vmem>>, vector<33x264xf32>,
      %cst_50 = arith.constant 0.000000e+00 : f32
      %52 = vector.broadcast %cst_50 : f32 to vector<33x264xf32>
      %c0_51 = arith.constant 0 : index
      %c0_52 = arith.constant 0 : index
      %53 = vector.load %arg8[%c0_51, %c0_52] : memref<33x264xf32, #tpu.memory_space<vmem>>, vector<33x264xf32>
      tpu.vector_store %arg8[%c0_51, %c0_52], %52 {strides = array<i32>} : memref<33x264xf32, #tpu.memory_space<vmem>>, vector<33x264xf32>,
    } else {
    }
    %c0 = arith.constant 0 : index
    %c0_1 = arith.constant 0 : index
    %c0_2 = arith.constant 0 : index
    %3 = vector.load %arg1[%c0, %c0_1, %c0_2] : memref<1x16x128xf32, #tpu.memory_space<vmem>>, vector<1x16x128xf32>
    %4 = vector.shape_cast %3 : vector<1x16x128xf32> to vector<16x128xf32>
    %c16 = arith.constant 16 : index
    %c128 = arith.constant 128 : index
    %5 = vector.load %arg7[%c16, %c128] : memref<33x264xf32, #tpu.memory_space<vmem>>, vector<16x128xf32>
    tpu.vector_store %arg7[%c16, %c128], %4 {strides = array<i32>} : memref<33x264xf32, #tpu.memory_space<vmem>>, vector<16x128xf32>,
    %c15 = arith.constant 15 : index
    %c120 = arith.constant 120 : index
    %6 = vector.load %arg7[%c15, %c120] : memref<33x264xf32, #tpu.memory_space<vmem>>, vector<16x144xf32>
    %c0_3 = arith.constant 0 : index
    %c0_4 = arith.constant 0 : index
    %c0_5 = arith.constant 0 : index
    %7 = vector.load %arg2[%c0_3, %c0_4, %c0_5] : memref<3x144x128xf32, #tpu.memory_space<vmem>>, vector<1x144x128xf32>
    %8 = vector.shape_cast %7 : vector<1x144x128xf32> to vector<144x128xf32>
    %cst = arith.constant dense<0.000000e+00> : vector<16x128xf32>
    %9 = tpu.matmul %6, %8, %cst {dimension_numbers = #tpu.dot_dimension_numbers<[1], [0], [0], [1], [0, 0, 1, 1], [], []>} : vector<16x144xf32>, vector<144x128xf32>, vector<16x128xf32> -> vector<16x128xf32>
    %c16_6 = arith.constant 16 : index
    %c120_7 = arith.constant 120 : index
    %10 = vector.load %arg7[%c16_6, %c120_7] : memref<33x264xf32, #tpu.memory_space<vmem>>, vector<16x144xf32>
    %c1 = arith.constant 1 : index
    %c0_8 = arith.constant 0 : index
    %c0_9 = arith.constant 0 : index
    %11 = vector.load %arg2[%c1, %c0_8, %c0_9] : memref<3x144x128xf32, #tpu.memory_space<vmem>>, vector<1x144x128xf32>
    %12 = vector.shape_cast %11 : vector<1x144x128xf32> to vector<144x128xf32>
    %cst_10 = arith.constant dense<0.000000e+00> : vector<16x128xf32>
    %13 = tpu.matmul %10, %12, %cst_10 {dimension_numbers = #tpu.dot_dimension_numbers<[1], [0], [0], [1], [0, 0, 1, 1], [], []>} : vector<16x144xf32>, vector<144x128xf32>, vector<16x128xf32> -> vector<16x128xf32>
    %14 = arith.addf %9, %13 : vector<16x128xf32>
    %c17 = arith.constant 17 : index
    %c120_11 = arith.constant 120 : index
    %15 = vector.load %arg7[%c17, %c120_11] : memref<33x264xf32, #tpu.memory_space<vmem>>, vector<16x144xf32>
    %c2 = arith.constant 2 : index
    %c0_12 = arith.constant 0 : index
    %c0_13 = arith.constant 0 : index
    %16 = vector.load %arg2[%c2, %c0_12, %c0_13] : memref<3x144x128xf32, #tpu.memory_space<vmem>>, vector<1x144x128xf32>
    %17 = vector.shape_cast %16 : vector<1x144x128xf32> to vector<144x128xf32>
    %cst_14 = arith.constant dense<0.000000e+00> : vector<16x128xf32>
    %18 = tpu.matmul %15, %17, %cst_14 {dimension_numbers = #tpu.dot_dimension_numbers<[1], [0], [0], [1], [0, 0, 1, 1], [], []>} : vector<16x144xf32>, vector<144x128xf32>, vector<16x128xf32> -> vector<16x128xf32>
    %19 = arith.addf %14, %18 : vector<16x128xf32>
    %c0_15 = arith.constant 0 : index
    %c0_16 = arith.constant 0 : index
    %20 = vector.load %arg3[%c0_15, %c0_16] : memref<1x128xf32, #tpu.memory_space<vmem>>, vector<1x128xf32>
    %21 = vector.broadcast %20 : vector<1x128xf32> to vector<16x128xf32>
    %22 = arith.addf %19, %21 : vector<16x128xf32>
    %cst_17 = arith.constant 0.000000e+00 : f32
    %23 = vector.broadcast %cst_17 : f32 to vector<16x128xf32>
    %24 = arith.maximumf %22, %23 : vector<16x128xf32>
    %c16_18 = arith.constant 16 : index
    %c128_19 = arith.constant 128 : index
    %25 = vector.load %arg8[%c16_18, %c128_19] : memref<33x264xf32, #tpu.memory_space<vmem>>, vector<16x128xf32>
    tpu.vector_store %arg8[%c16_18, %c128_19], %24 {strides = array<i32>} : memref<33x264xf32, #tpu.memory_space<vmem>>, vector<16x128xf32>,
    %c15_20 = arith.constant 15 : index
    %c120_21 = arith.constant 120 : index
    %26 = vector.load %arg8[%c15_20, %c120_21] : memref<33x264xf32, #tpu.memory_space<vmem>>, vector<16x144xf32>
    %c0_22 = arith.constant 0 : index
    %c0_23 = arith.constant 0 : index
    %c0_24 = arith.constant 0 : index
    %27 = vector.load %arg4[%c0_22, %c0_23, %c0_24] : memref<3x144x128xf32, #tpu.memory_space<vmem>>, vector<1x144x128xf32>
    %28 = vector.shape_cast %27 : vector<1x144x128xf32> to vector<144x128xf32>
    %cst_25 = arith.constant dense<0.000000e+00> : vector<16x128xf32>
    %29 = tpu.matmul %26, %28, %cst_25 {dimension_numbers = #tpu.dot_dimension_numbers<[1], [0], [0], [1], [0, 0, 1, 1], [], []>} : vector<16x144xf32>, vector<144x128xf32>, vector<16x128xf32> -> vector<16x128xf32>
    %c16_26 = arith.constant 16 : index
    %c120_27 = arith.constant 120 : index
    %30 = vector.load %arg8[%c16_26, %c120_27] : memref<33x264xf32, #tpu.memory_space<vmem>>, vector<16x144xf32>
    %c1_28 = arith.constant 1 : index
    %c0_29 = arith.constant 0 : index
    %c0_30 = arith.constant 0 : index
    %31 = vector.load %arg4[%c1_28, %c0_29, %c0_30] : memref<3x144x128xf32, #tpu.memory_space<vmem>>, vector<1x144x128xf32>
    %32 = vector.shape_cast %31 : vector<1x144x128xf32> to vector<144x128xf32>
    %cst_31 = arith.constant dense<0.000000e+00> : vector<16x128xf32>
    %33 = tpu.matmul %30, %32, %cst_31 {dimension_numbers = #tpu.dot_dimension_numbers<[1], [0], [0], [1], [0, 0, 1, 1], [], []>} : vector<16x144xf32>, vector<144x128xf32>, vector<16x128xf32> -> vector<16x128xf32>
    %34 = arith.addf %29, %33 : vector<16x128xf32>
    %c17_32 = arith.constant 17 : index
    %c120_33 = arith.constant 120 : index
    %35 = vector.load %arg8[%c17_32, %c120_33] : memref<33x264xf32, #tpu.memory_space<vmem>>, vector<16x144xf32>
    %c2_34 = arith.constant 2 : index
    %c0_35 = arith.constant 0 : index
    %c0_36 = arith.constant 0 : index
    %36 = vector.load %arg4[%c2_34, %c0_35, %c0_36] : memref<3x144x128xf32, #tpu.memory_space<vmem>>, vector<1x144x128xf32>
    %37 = vector.shape_cast %36 : vector<1x144x128xf32> to vector<144x128xf32>
    %cst_37 = arith.constant dense<0.000000e+00> : vector<16x128xf32>
    %38 = tpu.matmul %35, %37, %cst_37 {dimension_numbers = #tpu.dot_dimension_numbers<[1], [0], [0], [1], [0, 0, 1, 1], [], []>} : vector<16x144xf32>, vector<144x128xf32>, vector<16x128xf32> -> vector<16x128xf32>
    %39 = arith.addf %34, %38 : vector<16x128xf32>
    %c0_38 = arith.constant 0 : index
    %c0_39 = arith.constant 0 : index
    %40 = vector.load %arg5[%c0_38, %c0_39] : memref<1x128xf32, #tpu.memory_space<vmem>>, vector<1x128xf32>
    %41 = vector.broadcast %40 : vector<1x128xf32> to vector<16x128xf32>
    %42 = arith.addf %39, %41 : vector<16x128xf32>
    %c0_40 = arith.constant 0 : index
    %c0_41 = arith.constant 0 : index
    %c0_42 = arith.constant 0 : index
    %43 = vector.load %arg1[%c0_40, %c0_41, %c0_42] : memref<1x16x128xf32, #tpu.memory_space<vmem>>, vector<1x16x128xf32>
    %44 = vector.shape_cast %43 : vector<1x16x128xf32> to vector<16x128xf32>
    %45 = arith.addf %42, %44 : vector<16x128xf32>
    %cst_43 = arith.constant 0.000000e+00 : f32
    %46 = vector.broadcast %cst_43 : f32 to vector<16x128xf32>
    %47 = arith.maximumf %45, %46 : vector<16x128xf32>
    %48 = vector.shape_cast %47 : vector<16x128xf32> to vector<1x16x128xf32>
    %c0_44 = arith.constant 0 : index
    %c0_45 = arith.constant 0 : index
    %c0_46 = arith.constant 0 : index
    %49 = vector.load %arg6[%c0_44, %c0_45, %c0_46] : memref<1x16x128xf32, #tpu.memory_space<vmem>>, vector<1x16x128xf32>
    tpu.vector_store %arg6[%c0_44, %c0_45, %c0_46], %48 {strides = array<i32>} : memref<1x16x128xf32, #tpu.memory_space<vmem>>, vector<1x16x128xf32>,
    return
  }
  func.func @transform_0(%arg0: i32) -> (i32, i32, i32) {
    %c0_i32 = arith.constant 0 : i32
    %c0_i32_0 = arith.constant 0 : i32
    %c0_i32_1 = arith.constant 0 : i32
    return %arg0, %c0_i32, %c0_i32_0 : i32, i32, i32
  }
  func.func @transform_1(%arg0: i32) -> (i32, i32, i32) {
    %c0_i32 = arith.constant 0 : i32
    %c0_i32_0 = arith.constant 0 : i32
    %c0_i32_1 = arith.constant 0 : i32
    %c0_i32_2 = arith.constant 0 : i32
    return %c0_i32, %c0_i32_0, %c0_i32_1 : i32, i32, i32
  }
  func.func @transform_2(%arg0: i32) -> (i32, i32) {
    %c0_i32 = arith.constant 0 : i32
    %c0_i32_0 = arith.constant 0 : i32
    %c0_i32_1 = arith.constant 0 : i32
    return %c0_i32, %c0_i32_0 : i32, i32
  }
  func.func @transform_3(%arg0: i32) -> (i32, i32, i32) {
    %c0_i32 = arith.constant 0 : i32
    %c0_i32_0 = arith.constant 0 : i32
    %c0_i32_1 = arith.constant 0 : i32
    %c0_i32_2 = arith.constant 0 : i32
    return %c0_i32, %c0_i32_0, %c0_i32_1 : i32, i32, i32
  }
  func.func @transform_4(%arg0: i32) -> (i32, i32) {
    %c0_i32 = arith.constant 0 : i32
    %c0_i32_0 = arith.constant 0 : i32
    %c0_i32_1 = arith.constant 0 : i32
    return %c0_i32, %c0_i32_0 : i32, i32
  }
  func.func @transform_5(%arg0: i32) -> (i32, i32, i32) {
    %c0_i32 = arith.constant 0 : i32
    %c0_i32_0 = arith.constant 0 : i32
    %c0_i32_1 = arith.constant 0 : i32
    return %arg0, %c0_i32, %c0_i32_0 : i32, i32, i32
  }
}

</mosaic_0001>

<llo_original>
// kernel: tpu_custom_call.1
$region0: #{tpu_custom_call.1}
  #allocation0 [shape = 'u32[]', space=smem, size = 0x4, offset = 0x4, fixed_abs, tag = 'smem constant byte address 0x4 - core index']
  #allocation1 [shape = 'u32[144,128]{1,0:T(1,128)}', space=vmem, size = 0x12000, scoped, tag = 'internal scratch']
  #allocation2 [shape = 'f32[33,264]{1,0:T(8,128)}', space=vmem, size = 0xf000, scoped, tag = 'scratch operand']
  #allocation3 [shape = 'f32[33,264]{1,0:T(8,128)}', space=vmem, size = 0xf000, scoped, tag = 'scratch operand']
  %s0 = inlined_call_operand.hbm [shape: f32[2,16,128], index: 0, kind: input, shape index: {}]
  %s1 = inlined_call_operand.hbm [shape: f32[3,144,128], index: 1, kind: input, shape index: {}]
  %s2 = inlined_call_operand.vmem [shape: f32[1,128], index: 2, kind: input, shape index: {}]
  %s3 = inlined_call_operand.hbm [shape: f32[3,144,128], index: 3, kind: input, shape index: {}]
  %s4 = inlined_call_operand.vmem [shape: f32[1,128], index: 4, kind: input, shape index: {}]
  %s5 = inlined_call_operand.hbm [shape: f32[2,16,128], index: 5, kind: output, shape index: {}]
  %s6 = sld [smem:[#allocation0]]
  $region69: #{tpu_custom_call.1} parent=0
    _
  %s8 = ssub.s32 1, %s6
  %s9 = scalar_select 0, %s8, %s6
  $region1: #{tpu_custom_call.1} parent=0
    #allocation4 [shape = 'u8[16384]{0}', space=vmem, size = 0x4000, scoped, tag = 'input window, operand 0']
    #allocation5 [shape = 's32[2]{0}', space=sflag, size = 0x8, scoped, tag = 'scoped memory for tpu_custom_call.1']
    #allocation6 [shape = 's32[2]{0}', space=sflag, size = 0x8, scoped, tag = 'scoped memory for tpu_custom_call.1']
    #allocation7 [shape = 'u8[221184]{0}', space=vmem, size = 0x36000, scoped, tag = 'input window, operand 1, single buffered']
    #allocation8 [shape = 's32[1]{0}', space=sflag, size = 0x4, scoped, tag = 'scoped memory for tpu_custom_call.1']
    #allocation9 [shape = 'u8[221184]{0}', space=vmem, size = 0x36000, scoped, tag = 'input window, operand 3, single buffered']
    #allocation10 [shape = 'u8[16384]{0}', space=vmem, size = 0x4000, scoped, tag = 'output window, operand 0']
    %10 = vsyncpa [#allocation5], 0
    %s11 = scalar_lea.sflag [#allocation5], 1
    %12 = vsyncpa %s11, 0
    %13 = vsyncpa [#allocation8], 0
    %14 = vsyncpa [#allocation6], 0
    %s15 = scalar_lea.sflag [#allocation6], 1
    %16 = vsyncpa %s15, 0
    loop: start=0, step=1, limit=4
    $region2: #{tpu_custom_call.1} parent=1 // loop_pre_header
      _
    $region3: #{tpu_custom_call.1} parent=1 // loop_header
      %s18 = sphi 0, %s22
      %p19 = scmp.ge.s32.totalorder %s18, 4
      %s28 = sphi 0, %s30
      %s31 = sphi 0, %s28
      %s32 = sphi 0, %s31
      %s48 = sphi 0, %s32
      %s52 = sphi 0, %s52
      %s54 = sphi 0, %s52
      %s55 = sphi 0, %s54
      %s69 = sphi 0, %s55
      %s73 = sphi 0, %s73
      %s75 = sphi 0, %s73
      %s76 = sphi 0, %s75
      %s90 = sphi 0, %s76
      %s94 = sphi 0, %s94
      %s96 = sphi 0, %s94
      %s97 = sphi 0, %s96
      %s111 = sphi 0, %s97
      %s115 = sphi 0, %s115
      %s117 = sphi 0, %s115
      %s118 = sphi 0, %s117
      %s132 = sphi 0, %s118
      %s138 = sphi 0, %s140
      %s141 = sphi 0, %s138
      %s142 = sphi 0, %s141
      %s158 = sphi 0, %s142
    $region4: #{tpu_custom_call.1} parent=1 // loop_header_branch
      %21 = sbr.rel (%p19) target = $region8
    $region5: #{tpu_custom_call.1} parent=1 // loop_body
      %s23 = ssub.s32 %s18, 1
      %s24 = ssub.s32 %s18, 2
      %s25 = sadd.s32 %s18, 1
      %s26 = ssub.s32 %s18, %s25
      %p27 = scmp.eq.s32.totalorder %s26, 0
      %s29 = sadd.s32 %s28, 1
      %s30 = scalar_select %p27, %s28, %s29
      %p33 = pneg %p27
      %p34 = scmp.eq.s32.totalorder %s18, 1
      %p35 = por %p33, %p34
      %p36 = scmp.ne.s32.totalorder %s28, %s31
      %p37 = scmp.eq.s32.totalorder %s18, 0
      %p38 = por %p36, %p37
      %p39 = scmp.ne.s32.totalorder %s28, %s31
      %p40 = scmp.eq.s32.totalorder %s23, 1
      %p41 = por %p39, %p40
      %p42 = scmp.ne.s32.totalorder %s31, %s32
      %p43 = scmp.eq.s32.totalorder %s23, 0
      %p44 = por %p42, %p43
      %p45 = scmp.ne.s32.totalorder %s31, %s32
      %p46 = scmp.eq.s32.totalorder %s24, 1
      %p47 = por %p45, %p46
      %p49 = scmp.ne.s32.totalorder %s32, %s48
      %p50 = scmp.eq.s32.totalorder %s24, 0
      %p51 = por %p49, %p50
      %s53 = sadd.s32 %s52, 1
      %p56 = scmp.eq.s32.totalorder %s18, 1
      %p57 = scmp.ne.s32.totalorder %s52, %s54
      %p58 = scmp.eq.s32.totalorder %s18, 0
      %p59 = por %p57, %p58
      %p60 = scmp.ne.s32.totalorder %s52, %s54
      %p61 = scmp.eq.s32.totalorder %s23, 1
      %p62 = por %p60, %p61
      %p63 = scmp.ne.s32.totalorder %s54, %s55
      %p64 = scmp.eq.s32.totalorder %s23, 0
      %p65 = por %p63, %p64
      %p66 = scmp.ne.s32.totalorder %s54, %s55
      %p67 = scmp.eq.s32.totalorder %s24, 1
      %p68 = por %p66, %p67
      %p70 = scmp.ne.s32.totalorder %s55, %s69
      %p71 = scmp.eq.s32.totalorder %s24, 0
      %p72 = por %p70, %p71
      %s74 = sadd.s32 %s73, 1
      %p77 = scmp.eq.s32.totalorder %s18, 1
      %p78 = scmp.ne.s32.totalorder %s73, %s75
      %p79 = scmp.eq.s32.totalorder %s18, 0
      %p80 = por %p78, %p79
      %p81 = scmp.ne.s32.totalorder %s73, %s75
      %p82 = scmp.eq.s32.totalorder %s23, 1
      %p83 = por %p81, %p82
      %p84 = scmp.ne.s32.totalorder %s75, %s76
      %p85 = scmp.eq.s32.totalorder %s23, 0
      %p86 = por %p84, %p85
      %p87 = scmp.ne.s32.totalorder %s75, %s76
      %p88 = scmp.eq.s32.totalorder %s24, 1
      %p89 = por %p87, %p88
      %p91 = scmp.ne.s32.totalorder %s76, %s90
      %p92 = scmp.eq.s32.totalorder %s24, 0
      %p93 = por %p91, %p92
      %s95 = sadd.s32 %s94, 1
      %p98 = scmp.eq.s32.totalorder %s18, 1
      %p99 = scmp.ne.s32.totalorder %s94, %s96
      %p100 = scmp.eq.s32.totalorder %s18, 0
      %p101 = por %p99, %p100
      %p102 = scmp.ne.s32.totalorder %s94, %s96
      %p103 = scmp.eq.s32.totalorder %s23, 1
      %p104 = por %p102, %p103
      %p105 = scmp.ne.s32.totalorder %s96, %s97
      %p106 = scmp.eq.s32.totalorder %s23, 0
      %p107 = por %p105, %p106
      %p108 = scmp.ne.s32.totalorder %s96, %s97
      %p109 = scmp.eq.s32.totalorder %s24, 1
      %p110 = por %p108, %p109
      %p112 = scmp.ne.s32.totalorder %s97, %s111
      %p113 = scmp.eq.s32.totalorder %s24, 0
      %p114 = por %p112, %p113
      %s116 = sadd.s32 %s115, 1
      %p119 = scmp.eq.s32.totalorder %s18, 1
      %p120 = scmp.ne.s32.totalorder %s115, %s117
      %p121 = scmp.eq.s32.totalorder %s18, 0
      %p122 = por %p120, %p121
      %p123 = scmp.ne.s32.totalorder %s115, %s117
      %p124 = scmp.eq.s32.totalorder %s23, 1
      %p125 = por %p123, %p124
      %p126 = scmp.ne.s32.totalorder %s117, %s118
      %p127 = scmp.eq.s32.totalorder %s23, 0
      %p128 = por %p126, %p127
      %p129 = scmp.ne.s32.totalorder %s117, %s118
      %p130 = scmp.eq.s32.totalorder %s24, 1
      %p131 = por %p129, %p130
      %p133 = scmp.ne.s32.totalorder %s118, %s132
      %p134 = scmp.eq.s32.totalorder %s24, 0
      %p135 = por %p133, %p134
      %s136 = ssub.s32 %s18, %s25
      %p137 = scmp.eq.s32.totalorder %s136, 0
      %s139 = sadd.s32 %s138, 1
      %s140 = scalar_select %p137, %s138, %s139
      %p143 = pneg %p137
      %p144 = scmp.eq.s32.totalorder %s18, 1
      %p145 = por %p143, %p144
      %p146 = scmp.ne.s32.totalorder %s138, %s141
      %p147 = scmp.eq.s32.totalorder %s18, 0
      %p148 = por %p146, %p147
      %p149 = scmp.ne.s32.totalorder %s138, %s141
      %p150 = scmp.eq.s32.totalorder %s23, 1
      %p151 = por %p149, %p150
      %p152 = scmp.ne.s32.totalorder %s141, %s142
      %p153 = scmp.eq.s32.totalorder %s23, 0
      %p154 = por %p152, %p153
      %p155 = scmp.ne.s32.totalorder %s141, %s142
      %p156 = scmp.eq.s32.totalorder %s24, 1
      %p157 = por %p155, %p156
      %p159 = scmp.ne.s32.totalorder %s142, %s158
      %p160 = scmp.eq.s32.totalorder %s24, 0
      %p161 = por %p159, %p160
      %p162 = scmp.le.s32.totalorder 1, %s18
      %p163 = scmp.lt.s32.totalorder %s18, 3
      %p164 = pnand %p162, %p163
      %p165 = pneg %p164
      // Predicated region
      $region9: #{tpu_custom_call.1} parent=5 // pred_check
        _
      $region10: #{tpu_custom_call.1} parent=5 // pred_check_branch
        %167 = sbr.rel (%p164) target = $region12
      $region11: #{tpu_custom_call.1} parent=5 // pred_region
        %s168 = ssub.s32 %s18, 1
        // Predicated region
        $region13: #{tpu_custom_call.1} parent=11 // pred_check
          %p169 = pneg %p65
        $region14: #{tpu_custom_call.1} parent=11 // pred_check_branch
          %171 = sbr.rel (%p169) target = $region16
        $region15: #{tpu_custom_call.1} parent=11 // pred_region
          %s173 = ssub.s32 6912, 6912
          %174 = vsyncadd [#allocation8], %s173
          %s175 = sshll.u32 [#allocation7], 4
          %s176 = int_to_ptr.vmem [resolvable:$true] %s175
          %181 = dma.hbm_to_vmem [thread:$0]  %s1, 6912, %s176, [#allocation8], 128, 128, 8
        $region16: #{tpu_custom_call.1} parent=11 // pred_fallthru
          _
        // Predicated region
        $region17: #{tpu_custom_call.1} parent=11 // pred_check
          %p182 = pneg %p86
        $region18: #{tpu_custom_call.1} parent=11 // pred_check_branch
          %184 = sbr.rel (%p182) target = $region20
        $region19: #{tpu_custom_call.1} parent=11 // pred_region
          _
        $region20: #{tpu_custom_call.1} parent=11 // pred_fallthru
          _
        // Predicated region
        $region21: #{tpu_custom_call.1} parent=11 // pred_check
          %p185 = pneg %p107
        $region22: #{tpu_custom_call.1} parent=11 // pred_check_branch
          %187 = sbr.rel (%p185) target = $region24
        $region23: #{tpu_custom_call.1} parent=11 // pred_region
          %s189 = ssub.s32 6912, 6912
          %190 = vsyncadd [#allocation8], %s189
          %s191 = sshll.u32 [#allocation9], 4
          %s192 = int_to_ptr.vmem [resolvable:$true] %s191
          %197 = dma.hbm_to_vmem [thread:$0]  %s3, 6912, %s192, [#allocation8], 128, 128, 8
        $region24: #{tpu_custom_call.1} parent=11 // pred_fallthru
          _
        // Predicated region
        $region25: #{tpu_custom_call.1} parent=11 // pred_check
          %p198 = pneg %p128
        $region26: #{tpu_custom_call.1} parent=11 // pred_check_branch
          %200 = sbr.rel (%p198) target = $region28
        $region27: #{tpu_custom_call.1} parent=11 // pred_region
          _
        $region28: #{tpu_custom_call.1} parent=11 // pred_fallthru
          _
      $region12: #{tpu_custom_call.1} parent=5 // pred_fallthru
        _
      %p201 = scmp.lt.s32.totalorder %s18, 2
      // Predicated region
      $region29: #{tpu_custom_call.1} parent=5 // pred_check
        %p202 = pneg %p201
      $region30: #{tpu_custom_call.1} parent=5 // pred_check_branch
        %204 = sbr.rel (%p202) target = $region32
      $region31: #{tpu_custom_call.1} parent=5 // pred_region
        // Predicated region
        $region33: #{tpu_custom_call.1} parent=31 // pred_check
          %p205 = pneg %p38
        $region34: #{tpu_custom_call.1} parent=31 // pred_check_branch
          %207 = sbr.rel (%p205) target = $region36
        $region35: #{tpu_custom_call.1} parent=31 // pred_region
          %s208 = sand.u32 %s28, 1
          %s209 = scalar_lea.sflag [#allocation5], %s208
          %s210 = sand.u32 %s28, 1
          %s211 = smul.addr %s210, 16
          %s212 = scalar_lea.vmem [#allocation4], %s211
          %s214 = ssub.s32 256, 256
          %215 = vsyncadd %s209, %s214
          %s216 = smul.addr %s18, 2
          %s217 = smul.addr %s216, 128
          %s218 = scalar_lea.hbm %s0, %s217
          %s219 = sshll.u32 %s212, 4
          %s220 = int_to_ptr.vmem [resolvable:$true] %s219
          %225 = dma.hbm_to_vmem [thread:$0]  %s218, 256, %s220, %s209, 128, 128, 8
        $region36: #{tpu_custom_call.1} parent=31 // pred_fallthru
          _
      $region32: #{tpu_custom_call.1} parent=5 // pred_fallthru
        _
      %p226 = scmp.le.s32.totalorder 1, %s18
      %p227 = scmp.lt.s32.totalorder %s18, 3
      %p228 = pnand %p226, %p227
      %p229 = pneg %p228
      // Predicated region
      $region37: #{tpu_custom_call.1} parent=5 // pred_check
        _
      $region38: #{tpu_custom_call.1} parent=5 // pred_check_branch
        %231 = sbr.rel (%p228) target = $region40
      $region39: #{tpu_custom_call.1} parent=5 // pred_region
        %s232 = ssub.s32 %s18, 1
        %s233 = sand.u32 %s31, 1
        %s234 = scalar_lea.sflag [#allocation5], %s233
        %s235 = sand.u32 %s31, 1
        %s236 = smul.addr %s235, 16
        %s237 = scalar_lea.vmem [#allocation4], %s236
        // Predicated region
        $region41: #{tpu_custom_call.1} parent=39 // pred_check
          %p238 = pneg %p44
        $region42: #{tpu_custom_call.1} parent=39 // pred_check_branch
          %240 = sbr.rel (%p238) target = $region44
        $region43: #{tpu_custom_call.1} parent=39 // pred_region
          %241 = dma.done %s234, 256
        $region44: #{tpu_custom_call.1} parent=39 // pred_fallthru
          _
        // Predicated region
        $region45: #{tpu_custom_call.1} parent=39 // pred_check
          %p242 = pneg %p65
        $region46: #{tpu_custom_call.1} parent=39 // pred_check_branch
          %244 = sbr.rel (%p242) target = $region48
        $region47: #{tpu_custom_call.1} parent=39 // pred_region
          %245 = dma.done [#allocation8], 6912
        $region48: #{tpu_custom_call.1} parent=39 // pred_fallthru
          _
        // Predicated region
        $region49: #{tpu_custom_call.1} parent=39 // pred_check
          %p246 = pneg %p107
        $region50: #{tpu_custom_call.1} parent=39 // pred_check_branch
          %248 = sbr.rel (%p246) target = $region52
        $region51: #{tpu_custom_call.1} parent=39 // pred_region
          %249 = dma.done [#allocation8], 6912
        $region52: #{tpu_custom_call.1} parent=39 // pred_fallthru
          _
        %s250 = sand.u32 %s31, 1
        %s251 = scalar_lea.sflag [#allocation5], %s250
        %s252 = sand.u32 %s31, 1
        %s253 = smul.addr %s252, 16
        %s254 = scalar_lea.vmem [#allocation4], %s253
        %p255 = pneg %p44
        %p256 = pneg %p41
        %p257 = pneg %p65
        %p258 = pneg %p62
        %p259 = pneg %p86
        %p260 = pneg %p83
        %p261 = pneg %p107
        %p262 = pneg %p104
        %p263 = pneg %p128
        %p264 = pneg %p125
        %p265 = pneg %p154
        %p266 = pneg %p151
        %s267 = sand.u32 %s141, 1
        %s268 = scalar_lea.sflag [#allocation6], %s267
        %s269 = sand.u32 %s141, 1
        %s270 = smul.addr %s269, 16
        %s271 = scalar_lea.vmem [#allocation10], %s270
        %p272 = scmp.eq.s32.totalorder %s23, 0
        // Predicated region
        $region53: #{tpu_custom_call.1} parent=39 // pred_check
          %p273 = pneg %p272
        $region54: #{tpu_custom_call.1} parent=39 // pred_check_branch
          %275 = sbr.rel (%p273) target = $region56
        $region55: #{tpu_custom_call.1} parent=39 // pred_region
          %276 = vst [vmem:[#allocation2] sm:$0xff] 0.0
          %277 = vst [vmem:[#allocation2 + $0x8] sm:$0xff] 0.0
          %vm278 = vcmask 64512
          %279 = vst.msk [vmem:[#allocation2 + $0x10] sm:$0xff] %vm278, 0.0
          %280 = vst [vmem:[#allocation2 + $0x18] sm:$0xff] 0.0
          %281 = vst [vmem:[#allocation2 + $0x20] sm:$0xff] 0.0
          %282 = vst.msk [vmem:[#allocation2 + $0x28] sm:$0xff] %vm278, 0.0
          %283 = vst [vmem:[#allocation2 + $0x30] sm:$0xff] 0.0
          %284 = vst [vmem:[#allocation2 + $0x38] sm:$0xff] 0.0
          %285 = vst.msk [vmem:[#allocation2 + $0x40] sm:$0xff] %vm278, 0.0
          %286 = vst [vmem:[#allocation2 + $0x48] sm:$0xff] 0.0
          %287 = vst [vmem:[#allocation2 + $0x50] sm:$0xff] 0.0
          %288 = vst.msk [vmem:[#allocation2 + $0x58] sm:$0xff] %vm278, 0.0
          %289 = vst [vmem:[#allocation2 + $0x60] sm:$0x1] 0.0
          %290 = vst [vmem:[#allocation2 + $0x68] sm:$0x1] 0.0
          %vm291 = vcmask 57344
          %292 = vst.msk [vmem:[#allocation2 + $0x70] sm:$0x1] %vm291, 0.0
          %293 = vst [vmem:[#allocation3] sm:$0xff] 0.0
          %294 = vst [vmem:[#allocation3 + $0x8] sm:$0xff] 0.0
          %295 = vst.msk [vmem:[#allocation3 + $0x10] sm:$0xff] %vm278, 0.0
          %296 = vst [vmem:[#allocation3 + $0x18] sm:$0xff] 0.0
          %297 = vst [vmem:[#allocation3 + $0x20] sm:$0xff] 0.0
          %298 = vst.msk [vmem:[#allocation3 + $0x28] sm:$0xff] %vm278, 0.0
          %299 = vst [vmem:[#allocation3 + $0x30] sm:$0xff] 0.0
          %300 = vst [vmem:[#allocation3 + $0x38] sm:$0xff] 0.0
          %301 = vst.msk [vmem:[#allocation3 + $0x40] sm:$0xff] %vm278, 0.0
          %302 = vst [vmem:[#allocation3 + $0x48] sm:$0xff] 0.0
          %303 = vst [vmem:[#allocation3 + $0x50] sm:$0xff] 0.0
          %304 = vst.msk [vmem:[#allocation3 + $0x58] sm:$0xff] %vm278, 0.0
          %305 = vst [vmem:[#allocation3 + $0x60] sm:$0x1] 0.0
          %306 = vst [vmem:[#allocation3 + $0x68] sm:$0x1] 0.0
          %307 = vst.msk [vmem:[#allocation3 + $0x70] sm:$0x1] %vm291, 0.0
        $region56: #{tpu_custom_call.1} parent=39 // pred_fallthru
          _
        %v308 = vld [vmem:[%s237] sm:$0xff]
        %v309 = vld [vmem:[%s237 + $0x8] sm:$0xff]
        %310 = vst [vmem:[#allocation2 + $0x38] sm:$0xff] %v308
        %311 = vst [vmem:[#allocation2 + $0x50] sm:$0xff] %v309
        %v312 = vld [vmem:[#allocation2 + $0x18] sm:$0x80]
        %v313 = vld [vmem:[#allocation2 + $0x20] sm:$0x80]
        %v314 = vld [vmem:[#allocation2 + $0x28] sm:$0x80]
        %v315 = vld [vmem:[#allocation2 + $0x30] sm:$0xff]
        %v316 = vld [vmem:[#allocation2 + $0x38] sm:$0xff]
        %v317 = vld [vmem:[#allocation2 + $0x40] sm:$0xff]
        %v318 = vld [vmem:[#allocation2 + $0x48] sm:$0x7f]
        %v319 = vld [vmem:[#allocation2 + $0x50] sm:$0x7f]
        %v320 = vld [vmem:[#allocation2 + $0x58] sm:$0x7f]
        %v321 = vld [vmem:[#allocation7] sm:$0xff]
        %v322 = vld [vmem:[#allocation7 + $0x8] sm:$0xff]
        %v323 = vld [vmem:[#allocation7 + $0x10] sm:$0xff]
        %v324 = vld [vmem:[#allocation7 + $0x18] sm:$0xff]
        %v325 = vld [vmem:[#allocation7 + $0x20] sm:$0xff]
        %v326 = vld [vmem:[#allocation7 + $0x28] sm:$0xff]
        %v327 = vld [vmem:[#allocation7 + $0x30] sm:$0xff]
        %v328 = vld [vmem:[#allocation7 + $0x38] sm:$0xff]
        %v329 = vld [vmem:[#allocation7 + $0x40] sm:$0xff]
        %v330 = vld [vmem:[#allocation7 + $0x48] sm:$0xff]
        %v331 = vld [vmem:[#allocation7 + $0x50] sm:$0xff]
        %v332 = vld [vmem:[#allocation7 + $0x58] sm:$0xff]
        %v333 = vld [vmem:[#allocation7 + $0x60] sm:$0xff]
        %v334 = vld [vmem:[#allocation7 + $0x68] sm:$0xff]
        %v335 = vld [vmem:[#allocation7 + $0x70] sm:$0xff]
        %v336 = vld [vmem:[#allocation7 + $0x78] sm:$0xff]
        %v337 = vld [vmem:[#allocation7 + $0x80] sm:$0xff]
        %v338 = vld [vmem:[#allocation7 + $0x88] sm:$0xff]
        %v339 = vld [vmem:[#allocation2 + $0x48] sm:$0xff]
        %v340 = vld [vmem:[#allocation2 + $0x50] sm:$0xff]
        %v341 = vld [vmem:[#allocation2 + $0x58] sm:$0xff]
        %s342 = scalar_lea.vmem [#allocation7], 144
        %v343 = vld [vmem:[%s342] sm:$0xff]
        %v344 = vld [vmem:[%s342 + $0x8] sm:$0xff]
        %v345 = vld [vmem:[%s342 + $0x10] sm:$0xff]
        %v346 = vld [vmem:[%s342 + $0x18] sm:$0xff]
        %v347 = vld [vmem:[%s342 + $0x20] sm:$0xff]
        %v348 = vld [vmem:[%s342 + $0x28] sm:$0xff]
        %v349 = vld [vmem:[%s342 + $0x30] sm:$0xff]
        %v350 = vld [vmem:[%s342 + $0x38] sm:$0xff]
        %v351 = vld [vmem:[%s342 + $0x40] sm:$0xff]
        %v352 = vld [vmem:[%s342 + $0x48] sm:$0xff]
        %v353 = vld [vmem:[%s342 + $0x50] sm:$0xff]
        %v354 = vld [vmem:[%s342 + $0x58] sm:$0xff]
        %v355 = vld [vmem:[%s342 + $0x60] sm:$0xff]
        %v356 = vld [vmem:[%s342 + $0x68] sm:$0xff]
        %v357 = vld [vmem:[%s342 + $0x70] sm:$0xff]
        %v358 = vld [vmem:[%s342 + $0x78] sm:$0xff]
        %v359 = vld [vmem:[%s342 + $0x80] sm:$0xff]
        %v360 = vld [vmem:[%s342 + $0x88] sm:$0xff]
        %367 = vrot.lane.b32.xlu0 %v315, 8
        %v368 = vpop.permute.xlu0 %367
        %369 = vrot.lane.b32.xlu0 %v316, 8
        %v370 = vpop.permute.xlu0 %369
        %371 = vrot.lane.b32.xlu0 %v317, 8
        %v372 = vpop.permute.xlu0 %371
        %373 = vrot.lane.b32.xlu0 %v339, 8
        %v374 = vpop.permute.xlu0 %373
        %375 = vrot.lane.b32.xlu0 %v340, 8
        %v376 = vpop.permute.xlu0 %375
        %377 = vrot.lane.b32.xlu0 %v341, 8
        %v378 = vpop.permute.xlu0 %377
        %vm379 = vcmask 64512
        %v380 = vsel %vm379, %v368, %v370
        %v381 = vsel %vm379, %v370, %v372
        %v382 = vsel %vm379, %v374, %v376
        %v383 = vsel %vm379, %v376, %v378
        %vm386 = vcmask 130048
        %v387 = vsel %vm386, %v381, 0
        %v389 = vsel %vm386, %v383, 0
        %391 = vmatprep.subr.mxu0 0.0
        %392 = vmatpush1.msra.mxu0 %v343
        %393 = vmatprep.subr.mxu0 0.0
        %394 = vmatpush1.msra.mxu0 %v344
        %395 = vmatprep.subr.mxu0 0.0
        %396 = vmatpush1.msra.mxu0 %v345
        %397 = vmatprep.subr.mxu0 0.0
        %398 = vmatpush1.msra.mxu0 %v346
        %399 = vmatprep.subr.mxu0 0.0
        %400 = vmatpush1.msra.mxu0 %v347
        %401 = vmatprep.subr.mxu0 0.0
        %402 = vmatpush1.msra.mxu0 %v348
        %403 = vmatprep.subr.mxu0 0.0
        %404 = vmatpush1.msra.mxu0 %v349
        %405 = vmatprep.subr.mxu0 0.0
        %406 = vmatpush1.msra.mxu0 %v350
        %407 = vmatprep.subr.mxu0 0.0
        %408 = vmatpush1.msra.mxu0 %v351
        %409 = vmatprep.subr.mxu0 0.0
        %410 = vmatpush1.msra.mxu0 %v352
        %411 = vmatprep.subr.mxu0 0.0
        %412 = vmatpush1.msra.mxu0 %v353
        %413 = vmatprep.subr.mxu0 0.0
        %414 = vmatpush1.msra.mxu0 %v354
        %415 = vmatprep.subr.mxu0 0.0
        %416 = vmatpush1.msra.mxu0 %v355
        %417 = vmatprep.subr.mxu0 0.0
        %418 = vmatpush1.msra.mxu0 %v356
        %419 = vmatprep.subr.mxu0 0.0
        %420 = vmatpush1.msra.mxu0 %v357
        %421 = vmatprep.subr.mxu0 0.0
        %422 = vmatpush1.msra.mxu0 %v358
        %423 = vmatprep.subr.mxu0 0.0
        %424 = vmatpush1.msra.mxu0 %v359
        %425 = vmatprep.subr.mxu0 0.0
        %426 = vmatpush1.msra.mxu0 %v360
        %427 = vmatprep.subr.mxu0 0.0
        %428 = vmatpush1.msra.mxu0 0.0
        %429 = vmatprep.subr.mxu0 0.0
        %430 = vmatpush1.msra.mxu0 0.0
        %431 = vmatprep.subr.mxu0 0.0
        %432 = vmatpush1.msra.mxu0 0.0
        %433 = vmatprep.subr.mxu0 0.0
        %434 = vmatpush1.msra.mxu0 0.0
        %435 = vmatprep.subr.mxu0 0.0
        %436 = vmatpush1.msra.mxu0 0.0
        %437 = vmatprep.subr.mxu0 0.0
        %438 = vmatpush1.msra.mxu0 0.0
        %439 = vmatprep.subr.mxu0 0.0
        %440 = vmatpush1.msra.mxu0 0.0
        %441 = vmatprep.subr.mxu0 0.0
        %442 = vmatpush1.msra.mxu0 0.0
        %443 = vmatprep.subr.mxu0 0.0
        %444 = vmatpush1.msra.mxu0 0.0
        %445 = vmatprep.subr.mxu0 0.0
        %446 = vmatpush1.msra.mxu0 0.0
        %447 = vmatprep.subr.mxu0 0.0
        %448 = vmatpush1.msra.mxu0 0.0
        %449 = vmatprep.subr.mxu0 0.0
        %450 = vmatpush1.msra.mxu0 0.0
        %451 = vmatprep.subr.mxu0 0.0
        %452 = vmatpush1.msra.mxu0 0.0
        %453 = vmatprep.subr.mxu0 0.0
        %454 = vmatpush1.msra.mxu0 0.0
        %455 = vmatprep.mubr.f32.mxu0 %v387
        %456 = vmatmul.mubr.f32.gmra.mrb[0].mxu0 %v380
        %v457 = vpop.f32.mrb[0].mxu0
        %v458 = vadd.f32 0.0, %v457
        %v459 = vpop.f32.mrb[0].mxu0
        %460 = vmatprep.mubr.f32.mxu0 %v389
        %461 = vmatmul.mubr.f32.gmra.mrb[0].mxu0 %v382
        %v462 = vpop.f32.mrb[0].mxu0
        %v463 = vadd.f32 0.0, %v462
        %v464 = vpop.f32.mrb[0].mxu0
        %465 = vdwg.mxu0
        %vm472 = vcmask 1040384
        %v473 = vrot.slane %v312, 7
        %v474 = vrot.slane %v315, 7
        %v475 = vsel %vm472, %v473, %v474
        %v476 = vrot.slane %v313, 7
        %v477 = vrot.slane %v316, 7
        %v478 = vsel %vm472, %v476, %v477
        %v479 = vrot.slane %v314, 7
        %v480 = vrot.slane %v317, 7
        %v481 = vsel %vm472, %v479, %v480
        %v482 = vrot.slane %v318, 7
        %v483 = vsel %vm472, %v474, %v482
        %v484 = vrot.slane %v319, 7
        %v485 = vsel %vm472, %v477, %v484
        %v486 = vrot.slane %v320, 7
        %v487 = vsel %vm472, %v480, %v486
        %488 = vrot.lane.b32.xlu0 %v475, 8
        %v489 = vpop.permute.xlu0 %488
        %490 = vrot.lane.b32.xlu0 %v478, 8
        %v491 = vpop.permute.xlu0 %490
        %492 = vrot.lane.b32.xlu0 %v481, 8
        %v493 = vpop.permute.xlu0 %492
        %494 = vrot.lane.b32.xlu0 %v483, 8
        %v495 = vpop.permute.xlu0 %494
        %496 = vrot.lane.b32.xlu0 %v485, 8
        %v497 = vpop.permute.xlu0 %496
        %498 = vrot.lane.b32.xlu0 %v487, 8
        %v499 = vpop.permute.xlu0 %498
        %v500 = vsel %vm379, %v489, %v491
        %v501 = vsel %vm379, %v491, %v493
        %v502 = vsel %vm379, %v495, %v497
        %v503 = vsel %vm379, %v497, %v499
        %v506 = vsel %vm386, %v501, 0
        %v508 = vsel %vm386, %v503, 0
        %510 = vmatprep.subr.mxu0 0.0
        %511 = vmatpush1.msra.mxu0 %v321
        %512 = vmatprep.subr.mxu0 0.0
        %513 = vmatpush1.msra.mxu0 %v322
        %514 = vmatprep.subr.mxu0 0.0
        %515 = vmatpush1.msra.mxu0 %v323
        %516 = vmatprep.subr.mxu0 0.0
        %517 = vmatpush1.msra.mxu0 %v324
        %518 = vmatprep.subr.mxu0 0.0
        %519 = vmatpush1.msra.mxu0 %v325
        %520 = vmatprep.subr.mxu0 0.0
        %521 = vmatpush1.msra.mxu0 %v326
        %522 = vmatprep.subr.mxu0 0.0
        %523 = vmatpush1.msra.mxu0 %v327
        %524 = vmatprep.subr.mxu0 0.0
        %525 = vmatpush1.msra.mxu0 %v328
        %526 = vmatprep.subr.mxu0 0.0
        %527 = vmatpush1.msra.mxu0 %v329
        %528 = vmatprep.subr.mxu0 0.0
        %529 = vmatpush1.msra.mxu0 %v330
        %530 = vmatprep.subr.mxu0 0.0
        %531 = vmatpush1.msra.mxu0 %v331
        %532 = vmatprep.subr.mxu0 0.0
        %533 = vmatpush1.msra.mxu0 %v332
        %534 = vmatprep.subr.mxu0 0.0
        %535 = vmatpush1.msra.mxu0 %v333
        %536 = vmatprep.subr.mxu0 0.0
        %537 = vmatpush1.msra.mxu0 %v334
        %538 = vmatprep.subr.mxu0 0.0
        %539 = vmatpush1.msra.mxu0 %v335
        %540 = vmatprep.subr.mxu0 0.0
        %541 = vmatpush1.msra.mxu0 %v336
        %542 = vmatprep.subr.mxu0 0.0
        %543 = vmatpush1.msra.mxu0 %v337
        %544 = vmatprep.subr.mxu0 0.0
        %545 = vmatpush1.msra.mxu0 %v338
        %546 = vmatprep.subr.mxu0 0.0
        %547 = vmatpush1.msra.mxu0 0.0
        %548 = vmatprep.subr.mxu0 0.0
        %549 = vmatpush1.msra.mxu0 0.0
        %550 = vmatprep.subr.mxu0 0.0
        %551 = vmatpush1.msra.mxu0 0.0
        %552 = vmatprep.subr.mxu0 0.0
        %553 = vmatpush1.msra.mxu0 0.0
        %554 = vmatprep.subr.mxu0 0.0
        %555 = vmatpush1.msra.mxu0 0.0
        %556 = vmatprep.subr.mxu0 0.0
        %557 = vmatpush1.msra.mxu0 0.0
        %558 = vmatprep.subr.mxu0 0.0
        %559 = vmatpush1.msra.mxu0 0.0
        %560 = vmatprep.subr.mxu0 0.0
        %561 = vmatpush1.msra.mxu0 0.0
        %562 = vmatprep.subr.mxu0 0.0
        %563 = vmatpush1.msra.mxu0 0.0
        %564 = vmatprep.subr.mxu0 0.0
        %565 = vmatpush1.msra.mxu0 0.0
        %566 = vmatprep.subr.mxu0 0.0
        %567 = vmatpush1.msra.mxu0 0.0
        %568 = vmatprep.subr.mxu0 0.0
        %569 = vmatpush1.msra.mxu0 0.0
        %570 = vmatprep.subr.mxu0 0.0
        %571 = vmatpush1.msra.mxu0 0.0
        %572 = vmatprep.subr.mxu0 0.0
        %573 = vmatpush1.msra.mxu0 0.0
        %574 = vmatprep.mubr.f32.mxu0 %v506
        %575 = vmatmul.mubr.f32.gmra.mrb[0].mxu0 %v500
        %v576 = vpop.f32.mrb[0].mxu0
        %v577 = vadd.f32 %v458, %v576
        %v578 = vpop.f32.mrb[0].mxu0
        %579 = vmatprep.mubr.f32.mxu0 %v508
        %580 = vmatmul.mubr.f32.gmra.mrb[0].mxu0 %v502
        %v581 = vpop.f32.mrb[0].mxu0
        %v582 = vadd.f32 %v463, %v581
        %v583 = vpop.f32.mrb[0].mxu0
        %584 = vdwg.mxu0
        %v585 = vld [vmem:[#allocation2 + $0x30] sm:$0xfe]
        %v586 = vld [vmem:[#allocation2 + $0x38] sm:$0xfe]
        %v587 = vld [vmem:[#allocation2 + $0x40] sm:$0xfe]
        %v588 = vld [vmem:[#allocation2 + $0x48] sm:$0xff]
        %v589 = vld [vmem:[#allocation2 + $0x50] sm:$0xff]
        %v590 = vld [vmem:[#allocation2 + $0x58] sm:$0xff]
        %v591 = vld [vmem:[#allocation2 + $0x60] sm:$0x1]
        %v592 = vld [vmem:[#allocation2 + $0x68] sm:$0x1]
        %v593 = vld [vmem:[#allocation2 + $0x70] sm:$0x1]
        %s594 = scalar_lea.vmem [#allocation7], 288
        %v595 = vld [vmem:[%s594] sm:$0xff]
        %v596 = vld [vmem:[%s594 + $0x8] sm:$0xff]
        %v597 = vld [vmem:[%s594 + $0x10] sm:$0xff]
        %v598 = vld [vmem:[%s594 + $0x18] sm:$0xff]
        %v599 = vld [vmem:[%s594 + $0x20] sm:$0xff]
        %v600 = vld [vmem:[%s594 + $0x28] sm:$0xff]
        %v601 = vld [vmem:[%s594 + $0x30] sm:$0xff]
        %v602 = vld [vmem:[%s594 + $0x38] sm:$0xff]
        %v603 = vld [vmem:[%s594 + $0x40] sm:$0xff]
        %v604 = vld [vmem:[%s594 + $0x48] sm:$0xff]
        %v605 = vld [vmem:[%s594 + $0x50] sm:$0xff]
        %v606 = vld [vmem:[%s594 + $0x58] sm:$0xff]
        %v607 = vld [vmem:[%s594 + $0x60] sm:$0xff]
        %v608 = vld [vmem:[%s594 + $0x68] sm:$0xff]
        %v609 = vld [vmem:[%s594 + $0x70] sm:$0xff]
        %v610 = vld [vmem:[%s594 + $0x78] sm:$0xff]
        %v611 = vld [vmem:[%s594 + $0x80] sm:$0xff]
        %v612 = vld [vmem:[%s594 + $0x88] sm:$0xff]
        %vm622 = vcmask 1046528
        %v623 = vrot.slane %v585, 1
        %v624 = vrot.slane %v588, 1
        %v625 = vsel %vm622, %v623, %v624
        %v626 = vrot.slane %v586, 1
        %v627 = vrot.slane %v589, 1
        %v628 = vsel %vm622, %v626, %v627
        %v629 = vrot.slane %v587, 1
        %v630 = vrot.slane %v590, 1
        %v631 = vsel %vm622, %v629, %v630
        %v632 = vrot.slane %v591, 1
        %v633 = vsel %vm622, %v624, %v632
        %v634 = vrot.slane %v592, 1
        %v635 = vsel %vm622, %v627, %v634
        %v636 = vrot.slane %v593, 1
        %v637 = vsel %vm622, %v630, %v636
        %638 = vrot.lane.b32.xlu0 %v625, 8
        %v639 = vpop.permute.xlu0 %638
        %640 = vrot.lane.b32.xlu0 %v628, 8
        %v641 = vpop.permute.xlu0 %640
        %642 = vrot.lane.b32.xlu0 %v631, 8
        %v643 = vpop.permute.xlu0 %642
        %644 = vrot.lane.b32.xlu0 %v633, 8
        %v645 = vpop.permute.xlu0 %644
        %646 = vrot.lane.b32.xlu0 %v635, 8
        %v647 = vpop.permute.xlu0 %646
        %648 = vrot.lane.b32.xlu0 %v637, 8
        %v649 = vpop.permute.xlu0 %648
        %v650 = vsel %vm379, %v639, %v641
        %v651 = vsel %vm379, %v641, %v643
        %v652 = vsel %vm379, %v645, %v647
        %v653 = vsel %vm379, %v647, %v649
        %v656 = vsel %vm386, %v651, 0
        %v658 = vsel %vm386, %v653, 0
        %660 = vmatprep.subr.mxu0 0.0
        %661 = vmatpush1.msra.mxu0 %v595
        %662 = vmatprep.subr.mxu0 0.0
        %663 = vmatpush1.msra.mxu0 %v596
        %664 = vmatprep.subr.mxu0 0.0
        %665 = vmatpush1.msra.mxu0 %v597
        %666 = vmatprep.subr.mxu0 0.0
        %667 = vmatpush1.msra.mxu0 %v598
        %668 = vmatprep.subr.mxu0 0.0
        %669 = vmatpush1.msra.mxu0 %v599
        %670 = vmatprep.subr.mxu0 0.0
        %671 = vmatpush1.msra.mxu0 %v600
        %672 = vmatprep.subr.mxu0 0.0
        %673 = vmatpush1.msra.mxu0 %v601
        %674 = vmatprep.subr.mxu0 0.0
        %675 = vmatpush1.msra.mxu0 %v602
        %676 = vmatprep.subr.mxu0 0.0
        %677 = vmatpush1.msra.mxu0 %v603
        %678 = vmatprep.subr.mxu0 0.0
        %679 = vmatpush1.msra.mxu0 %v604
        %680 = vmatprep.subr.mxu0 0.0
        %681 = vmatpush1.msra.mxu0 %v605
        %682 = vmatprep.subr.mxu0 0.0
        %683 = vmatpush1.msra.mxu0 %v606
        %684 = vmatprep.subr.mxu0 0.0
        %685 = vmatpush1.msra.mxu0 %v607
        %686 = vmatprep.subr.mxu0 0.0
        %687 = vmatpush1.msra.mxu0 %v608
        %688 = vmatprep.subr.mxu0 0.0
        %689 = vmatpush1.msra.mxu0 %v609
        %690 = vmatprep.subr.mxu0 0.0
        %691 = vmatpush1.msra.mxu0 %v610
        %692 = vmatprep.subr.mxu0 0.0
        %693 = vmatpush1.msra.mxu0 %v611
        %694 = vmatprep.subr.mxu0 0.0
        %695 = vmatpush1.msra.mxu0 %v612
        %696 = vmatprep.subr.mxu0 0.0
        %697 = vmatpush1.msra.mxu0 0.0
        %698 = vmatprep.subr.mxu0 0.0
        %699 = vmatpush1.msra.mxu0 0.0
        %700 = vmatprep.subr.mxu0 0.0
        %701 = vmatpush1.msra.mxu0 0.0
        %702 = vmatprep.subr.mxu0 0.0
        %703 = vmatpush1.msra.mxu0 0.0
        %704 = vmatprep.subr.mxu0 0.0
        %705 = vmatpush1.msra.mxu0 0.0
        %706 = vmatprep.subr.mxu0 0.0
        %707 = vmatpush1.msra.mxu0 0.0
        %708 = vmatprep.subr.mxu0 0.0
        %709 = vmatpush1.msra.mxu0 0.0
        %710 = vmatprep.subr.mxu0 0.0
        %711 = vmatpush1.msra.mxu0 0.0
        %712 = vmatprep.subr.mxu0 0.0
        %713 = vmatpush1.msra.mxu0 0.0
        %714 = vmatprep.subr.mxu0 0.0
        %715 = vmatpush1.msra.mxu0 0.0
        %716 = vmatprep.subr.mxu0 0.0
        %717 = vmatpush1.msra.mxu0 0.0
        %718 = vmatprep.subr.mxu0 0.0
        %719 = vmatpush1.msra.mxu0 0.0
        %720 = vmatprep.subr.mxu0 0.0
        %721 = vmatpush1.msra.mxu0 0.0
        %722 = vmatprep.subr.mxu0 0.0
        %723 = vmatpush1.msra.mxu0 0.0
        %724 = vmatprep.mubr.f32.mxu0 %v656
        %725 = vmatmul.mubr.f32.gmra.mrb[0].mxu0 %v650
        %v726 = vpop.f32.mrb[0].mxu0
        %v727 = vadd.f32 0.0, %v726
        %v728 = vpop.f32.mrb[0].mxu0
        %729 = vmatprep.mubr.f32.mxu0 %v658
        %730 = vmatmul.mubr.f32.gmra.mrb[0].mxu0 %v652
        %v731 = vpop.f32.mrb[0].mxu0
        %v732 = vadd.f32 0.0, %v731
        %v733 = vpop.f32.mrb[0].mxu0
        %734 = vdwg.mxu0
        %v735 = vadd.f32 %v577, %v727
        %v736 = vadd.f32 %v582, %v732
        %v737 = vld [vmem:[%s2] sm:$0x1]
        %v739 = vlaneseq
        %v740 = vshrl.u32 %v739, 7
        %v741 = vsub.s32 0, %v740
        %v742 = vrot.slane %v737, %v741
        %v744 = vadd.f32 %v735, %v742
        %v745 = vadd.f32 %v736, %v742
        %v746 = vmax.f32 %v744, 0.0
        %v747 = vmax.f32 %v745, 0.0
        %748 = vst [vmem:[#allocation3 + $0x38] sm:$0xff] %v746
        %749 = vst [vmem:[#allocation3 + $0x50] sm:$0xff] %v747
        %v750 = vld [vmem:[#allocation3 + $0x18] sm:$0x80]
        %v751 = vld [vmem:[#allocation3 + $0x20] sm:$0x80]
        %v752 = vld [vmem:[#allocation3 + $0x28] sm:$0x80]
        %v753 = vld [vmem:[#allocation3 + $0x30] sm:$0xff]
        %v754 = vld [vmem:[#allocation3 + $0x38] sm:$0xff]
        %v755 = vld [vmem:[#allocation3 + $0x40] sm:$0xff]
        %v756 = vld [vmem:[#allocation3 + $0x48] sm:$0x7f]
        %v757 = vld [vmem:[#allocation3 + $0x50] sm:$0x7f]
        %v758 = vld [vmem:[#allocation3 + $0x58] sm:$0x7f]
        %v759 = vld [vmem:[#allocation9] sm:$0xff]
        %v760 = vld [vmem:[#allocation9 + $0x8] sm:$0xff]
        %v761 = vld [vmem:[#allocation9 + $0x10] sm:$0xff]
        %v762 = vld [vmem:[#allocation9 + $0x18] sm:$0xff]
        %v763 = vld [vmem:[#allocation9 + $0x20] sm:$0xff]
        %v764 = vld [vmem:[#allocation9 + $0x28] sm:$0xff]
        %v765 = vld [vmem:[#allocation9 + $0x30] sm:$0xff]
        %v766 = vld [vmem:[#allocation9 + $0x38] sm:$0xff]
        %v767 = vld [vmem:[#allocation9 + $0x40] sm:$0xff]
        %v768 = vld [vmem:[#allocation9 + $0x48] sm:$0xff]
        %v769 = vld [vmem:[#allocation9 + $0x50] sm:$0xff]
        %v770 = vld [vmem:[#allocation9 + $0x58] sm:$0xff]
        %v771 = vld [vmem:[#allocation9 + $0x60] sm:$0xff]
        %v772 = vld [vmem:[#allocation9 + $0x68] sm:$0xff]
        %v773 = vld [vmem:[#allocation9 + $0x70] sm:$0xff]
        %v774 = vld [vmem:[#allocation9 + $0x78] sm:$0xff]
        %v775 = vld [vmem:[#allocation9 + $0x80] sm:$0xff]
        %v776 = vld [vmem:[#allocation9 + $0x88] sm:$0xff]
        %v777 = vld [vmem:[#allocation3 + $0x48] sm:$0xff]
        %v778 = vld [vmem:[#allocation3 + $0x50] sm:$0xff]
        %v779 = vld [vmem:[#allocation3 + $0x58] sm:$0xff]
        %s780 = scalar_lea.vmem [#allocation9], 144
        %v781 = vld [vmem:[%s780] sm:$0xff]
        %v782 = vld [vmem:[%s780 + $0x8] sm:$0xff]
        %v783 = vld [vmem:[%s780 + $0x10] sm:$0xff]
        %v784 = vld [vmem:[%s780 + $0x18] sm:$0xff]
        %v785 = vld [vmem:[%s780 + $0x20] sm:$0xff]
        %v786 = vld [vmem:[%s780 + $0x28] sm:$0xff]
        %v787 = vld [vmem:[%s780 + $0x30] sm:$0xff]
        %v788 = vld [vmem:[%s780 + $0x38] sm:$0xff]
        %v789 = vld [vmem:[%s780 + $0x40] sm:$0xff]
        %v790 = vld [vmem:[%s780 + $0x48] sm:$0xff]
        %v791 = vld [vmem:[%s780 + $0x50] sm:$0xff]
        %v792 = vld [vmem:[%s780 + $0x58] sm:$0xff]
        %v793 = vld [vmem:[%s780 + $0x60] sm:$0xff]
        %v794 = vld [vmem:[%s780 + $0x68] sm:$0xff]
        %v795 = vld [vmem:[%s780 + $0x70] sm:$0xff]
        %v796 = vld [vmem:[%s780 + $0x78] sm:$0xff]
        %v797 = vld [vmem:[%s780 + $0x80] sm:$0xff]
        %v798 = vld [vmem:[%s780 + $0x88] sm:$0xff]
        %805 = vrot.lane.b32.xlu0 %v753, 8
        %v806 = vpop.permute.xlu0 %805
        %807 = vrot.lane.b32.xlu0 %v754, 8
        %v808 = vpop.permute.xlu0 %807
        %809 = vrot.lane.b32.xlu0 %v755, 8
        %v810 = vpop.permute.xlu0 %809
        %811 = vrot.lane.b32.xlu0 %v777, 8
        %v812 = vpop.permute.xlu0 %811
        %813 = vrot.lane.b32.xlu0 %v778, 8
        %v814 = vpop.permute.xlu0 %813
        %815 = vrot.lane.b32.xlu0 %v779, 8
        %v816 = vpop.permute.xlu0 %815
        %v817 = vsel %vm379, %v806, %v808
        %v818 = vsel %vm379, %v808, %v810
        %v819 = vsel %vm379, %v812, %v814
        %v820 = vsel %vm379, %v814, %v816
        %v823 = vsel %vm386, %v818, 0
        %v825 = vsel %vm386, %v820, 0
        %827 = vmatprep.subr.mxu0 0.0
        %828 = vmatpush1.msra.mxu0 %v781
        %829 = vmatprep.subr.mxu0 0.0
        %830 = vmatpush1.msra.mxu0 %v782
        %831 = vmatprep.subr.mxu0 0.0
        %832 = vmatpush1.msra.mxu0 %v783
        %833 = vmatprep.subr.mxu0 0.0
        %834 = vmatpush1.msra.mxu0 %v784
        %835 = vmatprep.subr.mxu0 0.0
        %836 = vmatpush1.msra.mxu0 %v785
        %837 = vmatprep.subr.mxu0 0.0
        %838 = vmatpush1.msra.mxu0 %v786
        %839 = vmatprep.subr.mxu0 0.0
        %840 = vmatpush1.msra.mxu0 %v787
        %841 = vmatprep.subr.mxu0 0.0
        %842 = vmatpush1.msra.mxu0 %v788
        %843 = vmatprep.subr.mxu0 0.0
        %844 = vmatpush1.msra.mxu0 %v789
        %845 = vmatprep.subr.mxu0 0.0
        %846 = vmatpush1.msra.mxu0 %v790
        %847 = vmatprep.subr.mxu0 0.0
        %848 = vmatpush1.msra.mxu0 %v791
        %849 = vmatprep.subr.mxu0 0.0
        %850 = vmatpush1.msra.mxu0 %v792
        %851 = vmatprep.subr.mxu0 0.0
        %852 = vmatpush1.msra.mxu0 %v793
        %853 = vmatprep.subr.mxu0 0.0
        %854 = vmatpush1.msra.mxu0 %v794
        %855 = vmatprep.subr.mxu0 0.0
        %856 = vmatpush1.msra.mxu0 %v795
        %857 = vmatprep.subr.mxu0 0.0
        %858 = vmatpush1.msra.mxu0 %v796
        %859 = vmatprep.subr.mxu0 0.0
        %860 = vmatpush1.msra.mxu0 %v797
        %861 = vmatprep.subr.mxu0 0.0
        %862 = vmatpush1.msra.mxu0 %v798
        %863 = vmatprep.subr.mxu0 0.0
        %864 = vmatpush1.msra.mxu0 0.0
        %865 = vmatprep.subr.mxu0 0.0
        %866 = vmatpush1.msra.mxu0 0.0
        %867 = vmatprep.subr.mxu0 0.0
        %868 = vmatpush1.msra.mxu0 0.0
        %869 = vmatprep.subr.mxu0 0.0
        %870 = vmatpush1.msra.mxu0 0.0
        %871 = vmatprep.subr.mxu0 0.0
        %872 = vmatpush1.msra.mxu0 0.0
        %873 = vmatprep.subr.mxu0 0.0
        %874 = vmatpush1.msra.mxu0 0.0
        %875 = vmatprep.subr.mxu0 0.0
        %876 = vmatpush1.msra.mxu0 0.0
        %877 = vmatprep.subr.mxu0 0.0
        %878 = vmatpush1.msra.mxu0 0.0
        %879 = vmatprep.subr.mxu0 0.0
        %880 = vmatpush1.msra.mxu0 0.0
        %881 = vmatprep.subr.mxu0 0.0
        %882 = vmatpush1.msra.mxu0 0.0
        %883 = vmatprep.subr.mxu0 0.0
        %884 = vmatpush1.msra.mxu0 0.0
        %885 = vmatprep.subr.mxu0 0.0
        %886 = vmatpush1.msra.mxu0 0.0
        %887 = vmatprep.subr.mxu0 0.0
        %888 = vmatpush1.msra.mxu0 0.0
        %889 = vmatprep.subr.mxu0 0.0
        %890 = vmatpush1.msra.mxu0 0.0
        %891 = vmatprep.mubr.f32.mxu0 %v823
        %892 = vmatmul.mubr.f32.gmra.mrb[0].mxu0 %v817
        %v893 = vpop.f32.mrb[0].mxu0
        %v894 = vadd.f32 0.0, %v893
        %v895 = vpop.f32.mrb[0].mxu0
        %896 = vmatprep.mubr.f32.mxu0 %v825
        %897 = vmatmul.mubr.f32.gmra.mrb[0].mxu0 %v819
        %v898 = vpop.f32.mrb[0].mxu0
        %v899 = vadd.f32 0.0, %v898
        %v900 = vpop.f32.mrb[0].mxu0
        %901 = vdwg.mxu0
        %v908 = vrot.slane %v750, 7
        %v909 = vrot.slane %v753, 7
        %v910 = vsel %vm472, %v908, %v909
        %v911 = vrot.slane %v751, 7
        %v912 = vrot.slane %v754, 7
        %v913 = vsel %vm472, %v911, %v912
        %v914 = vrot.slane %v752, 7
        %v915 = vrot.slane %v755, 7
        %v916 = vsel %vm472, %v914, %v915
        %v917 = vrot.slane %v756, 7
        %v918 = vsel %vm472, %v909, %v917
        %v919 = vrot.slane %v757, 7
        %v920 = vsel %vm472, %v912, %v919
        %v921 = vrot.slane %v758, 7
        %v922 = vsel %vm472, %v915, %v921
        %923 = vrot.lane.b32.xlu0 %v910, 8
        %v924 = vpop.permute.xlu0 %923
        %925 = vrot.lane.b32.xlu0 %v913, 8
        %v926 = vpop.permute.xlu0 %925
        %927 = vrot.lane.b32.xlu0 %v916, 8
        %v928 = vpop.permute.xlu0 %927
        %929 = vrot.lane.b32.xlu0 %v918, 8
        %v930 = vpop.permute.xlu0 %929
        %931 = vrot.lane.b32.xlu0 %v920, 8
        %v932 = vpop.permute.xlu0 %931
        %933 = vrot.lane.b32.xlu0 %v922, 8
        %v934 = vpop.permute.xlu0 %933
        %v935 = vsel %vm379, %v924, %v926
        %v936 = vsel %vm379, %v926, %v928
        %v937 = vsel %vm379, %v930, %v932
        %v938 = vsel %vm379, %v932, %v934
        %v941 = vsel %vm386, %v936, 0
        %v943 = vsel %vm386, %v938, 0
        %945 = vmatprep.subr.mxu0 0.0
        %946 = vmatpush1.msra.mxu0 %v759
        %947 = vmatprep.subr.mxu0 0.0
        %948 = vmatpush1.msra.mxu0 %v760
        %949 = vmatprep.subr.mxu0 0.0
        %950 = vmatpush1.msra.mxu0 %v761
        %951 = vmatprep.subr.mxu0 0.0
        %952 = vmatpush1.msra.mxu0 %v762
        %953 = vmatprep.subr.mxu0 0.0
        %954 = vmatpush1.msra.mxu0 %v763
        %955 = vmatprep.subr.mxu0 0.0
        %956 = vmatpush1.msra.mxu0 %v764
        %957 = vmatprep.subr.mxu0 0.0
        %958 = vmatpush1.msra.mxu0 %v765
        %959 = vmatprep.subr.mxu0 0.0
        %960 = vmatpush1.msra.mxu0 %v766
        %961 = vmatprep.subr.mxu0 0.0
        %962 = vmatpush1.msra.mxu0 %v767
        %963 = vmatprep.subr.mxu0 0.0
        %964 = vmatpush1.msra.mxu0 %v768
        %965 = vmatprep.subr.mxu0 0.0
        %966 = vmatpush1.msra.mxu0 %v769
        %967 = vmatprep.subr.mxu0 0.0
        %968 = vmatpush1.msra.mxu0 %v770
        %969 = vmatprep.subr.mxu0 0.0
        %970 = vmatpush1.msra.mxu0 %v771
        %971 = vmatprep.subr.mxu0 0.0
        %972 = vmatpush1.msra.mxu0 %v772
        %973 = vmatprep.subr.mxu0 0.0
        %974 = vmatpush1.msra.mxu0 %v773
        %975 = vmatprep.subr.mxu0 0.0
        %976 = vmatpush1.msra.mxu0 %v774
        %977 = vmatprep.subr.mxu0 0.0
        %978 = vmatpush1.msra.mxu0 %v775
        %979 = vmatprep.subr.mxu0 0.0
        %980 = vmatpush1.msra.mxu0 %v776
        %981 = vmatprep.subr.mxu0 0.0
        %982 = vmatpush1.msra.mxu0 0.0
        %983 = vmatprep.subr.mxu0 0.0
        %984 = vmatpush1.msra.mxu0 0.0
        %985 = vmatprep.subr.mxu0 0.0
        %986 = vmatpush1.msra.mxu0 0.0
        %987 = vmatprep.subr.mxu0 0.0
        %988 = vmatpush1.msra.mxu0 0.0
        %989 = vmatprep.subr.mxu0 0.0
        %990 = vmatpush1.msra.mxu0 0.0
        %991 = vmatprep.subr.mxu0 0.0
        %992 = vmatpush1.msra.mxu0 0.0
        %993 = vmatprep.subr.mxu0 0.0
        %994 = vmatpush1.msra.mxu0 0.0
        %995 = vmatprep.subr.mxu0 0.0
        %996 = vmatpush1.msra.mxu0 0.0
        %997 = vmatprep.subr.mxu0 0.0
        %998 = vmatpush1.msra.mxu0 0.0
        %999 = vmatprep.subr.mxu0 0.0
        %1000 = vmatpush1.msra.mxu0 0.0
        %1001 = vmatprep.subr.mxu0 0.0
        %1002 = vmatpush1.msra.mxu0 0.0
        %1003 = vmatprep.subr.mxu0 0.0
        %1004 = vmatpush1.msra.mxu0 0.0
        %1005 = vmatprep.subr.mxu0 0.0
        %1006 = vmatpush1.msra.mxu0 0.0
        %1007 = vmatprep.subr.mxu0 0.0
        %1008 = vmatpush1.msra.mxu0 0.0
        %1009 = vmatprep.mubr.f32.mxu0 %v941
        %1010 = vmatmul.mubr.f32.gmra.mrb[0].mxu0 %v935
        %v1011 = vpop.f32.mrb[0].mxu0
        %v1012 = vadd.f32 %v894, %v1011
        %v1013 = vpop.f32.mrb[0].mxu0
        %1014 = vmatprep.mubr.f32.mxu0 %v943
        %1015 = vmatmul.mubr.f32.gmra.mrb[0].mxu0 %v937
        %v1016 = vpop.f32.mrb[0].mxu0
        %v1017 = vadd.f32 %v899, %v1016
        %v1018 = vpop.f32.mrb[0].mxu0
        %1019 = vdwg.mxu0
        %v1020 = vld [vmem:[#allocation3 + $0x30] sm:$0xfe]
        %v1021 = vld [vmem:[#allocation3 + $0x38] sm:$0xfe]
        %v1022 = vld [vmem:[#allocation3 + $0x40] sm:$0xfe]
        %v1023 = vld [vmem:[#allocation3 + $0x48] sm:$0xff]
        %v1024 = vld [vmem:[#allocation3 + $0x50] sm:$0xff]
        %v1025 = vld [vmem:[#allocation3 + $0x58] sm:$0xff]
        %v1026 = vld [vmem:[#allocation3 + $0x60] sm:$0x1]
        %v1027 = vld [vmem:[#allocation3 + $0x68] sm:$0x1]
        %v1028 = vld [vmem:[#allocation3 + $0x70] sm:$0x1]
        %s1029 = scalar_lea.vmem [#allocation9], 288
        %v1030 = vld [vmem:[%s1029] sm:$0xff]
        %v1031 = vld [vmem:[%s1029 + $0x8] sm:$0xff]
        %v1032 = vld [vmem:[%s1029 + $0x10] sm:$0xff]
        %v1033 = vld [vmem:[%s1029 + $0x18] sm:$0xff]
        %v1034 = vld [vmem:[%s1029 + $0x20] sm:$0xff]
        %v1035 = vld [vmem:[%s1029 + $0x28] sm:$0xff]
        %v1036 = vld [vmem:[%s1029 + $0x30] sm:$0xff]
        %v1037 = vld [vmem:[%s1029 + $0x38] sm:$0xff]
        %v1038 = vld [vmem:[%s1029 + $0x40] sm:$0xff]
        %v1039 = vld [vmem:[%s1029 + $0x48] sm:$0xff]
        %v1040 = vld [vmem:[%s1029 + $0x50] sm:$0xff]
        %v1041 = vld [vmem:[%s1029 + $0x58] sm:$0xff]
        %v1042 = vld [vmem:[%s1029 + $0x60] sm:$0xff]
        %v1043 = vld [vmem:[%s1029 + $0x68] sm:$0xff]
        %v1044 = vld [vmem:[%s1029 + $0x70] sm:$0xff]
        %v1045 = vld [vmem:[%s1029 + $0x78] sm:$0xff]
        %v1046 = vld [vmem:[%s1029 + $0x80] sm:$0xff]
        %v1047 = vld [vmem:[%s1029 + $0x88] sm:$0xff]
        %v1057 = vrot.slane %v1020, 1
        %v1058 = vrot.slane %v1023, 1
        %v1059 = vsel %vm622, %v1057, %v1058
        %v1060 = vrot.slane %v1021, 1
        %v1061 = vrot.slane %v1024, 1
        %v1062 = vsel %vm622, %v1060, %v1061
        %v1063 = vrot.slane %v1022, 1
        %v1064 = vrot.slane %v1025, 1
        %v1065 = vsel %vm622, %v1063, %v1064
        %v1066 = vrot.slane %v1026, 1
        %v1067 = vsel %vm622, %v1058, %v1066
        %v1068 = vrot.slane %v1027, 1
        %v1069 = vsel %vm622, %v1061, %v1068
        %v1070 = vrot.slane %v1028, 1
        %v1071 = vsel %vm622, %v1064, %v1070
        %1072 = vrot.lane.b32.xlu0 %v1059, 8
        %v1073 = vpop.permute.xlu0 %1072
        %1074 = vrot.lane.b32.xlu0 %v1062, 8
        %v1075 = vpop.permute.xlu0 %1074
        %1076 = vrot.lane.b32.xlu0 %v1065, 8
        %v1077 = vpop.permute.xlu0 %1076
        %1078 = vrot.lane.b32.xlu0 %v1067, 8
        %v1079 = vpop.permute.xlu0 %1078
        %1080 = vrot.lane.b32.xlu0 %v1069, 8
        %v1081 = vpop.permute.xlu0 %1080
        %1082 = vrot.lane.b32.xlu0 %v1071, 8
        %v1083 = vpop.permute.xlu0 %1082
        %v1084 = vsel %vm379, %v1073, %v1075
        %v1085 = vsel %vm379, %v1075, %v1077
        %v1086 = vsel %vm379, %v1079, %v1081
        %v1087 = vsel %vm379, %v1081, %v1083
        %v1090 = vsel %vm386, %v1085, 0
        %v1092 = vsel %vm386, %v1087, 0
        %1094 = vmatprep.subr.mxu0 0.0
        %1095 = vmatpush1.msra.mxu0 %v1030
        %1096 = vmatprep.subr.mxu0 0.0
        %1097 = vmatpush1.msra.mxu0 %v1031
        %1098 = vmatprep.subr.mxu0 0.0
        %1099 = vmatpush1.msra.mxu0 %v1032
        %1100 = vmatprep.subr.mxu0 0.0
        %1101 = vmatpush1.msra.mxu0 %v1033
        %1102 = vmatprep.subr.mxu0 0.0
        %1103 = vmatpush1.msra.mxu0 %v1034
        %1104 = vmatprep.subr.mxu0 0.0
        %1105 = vmatpush1.msra.mxu0 %v1035
        %1106 = vmatprep.subr.mxu0 0.0
        %1107 = vmatpush1.msra.mxu0 %v1036
        %1108 = vmatprep.subr.mxu0 0.0
        %1109 = vmatpush1.msra.mxu0 %v1037
        %1110 = vmatprep.subr.mxu0 0.0
        %1111 = vmatpush1.msra.mxu0 %v1038
        %1112 = vmatprep.subr.mxu0 0.0
        %1113 = vmatpush1.msra.mxu0 %v1039
        %1114 = vmatprep.subr.mxu0 0.0
        %1115 = vmatpush1.msra.mxu0 %v1040
        %1116 = vmatprep.subr.mxu0 0.0
        %1117 = vmatpush1.msra.mxu0 %v1041
        %1118 = vmatprep.subr.mxu0 0.0
        %1119 = vmatpush1.msra.mxu0 %v1042
        %1120 = vmatprep.subr.mxu0 0.0
        %1121 = vmatpush1.msra.mxu0 %v1043
        %1122 = vmatprep.subr.mxu0 0.0
        %1123 = vmatpush1.msra.mxu0 %v1044
        %1124 = vmatprep.subr.mxu0 0.0
        %1125 = vmatpush1.msra.mxu0 %v1045
        %1126 = vmatprep.subr.mxu0 0.0
        %1127 = vmatpush1.msra.mxu0 %v1046
        %1128 = vmatprep.subr.mxu0 0.0
        %1129 = vmatpush1.msra.mxu0 %v1047
        %1130 = vmatprep.subr.mxu0 0.0
        %1131 = vmatpush1.msra.mxu0 0.0
        %1132 = vmatprep.subr.mxu0 0.0
        %1133 = vmatpush1.msra.mxu0 0.0
        %1134 = vmatprep.subr.mxu0 0.0
        %1135 = vmatpush1.msra.mxu0 0.0
        %1136 = vmatprep.subr.mxu0 0.0
        %1137 = vmatpush1.msra.mxu0 0.0
        %1138 = vmatprep.subr.mxu0 0.0
        %1139 = vmatpush1.msra.mxu0 0.0
        %1140 = vmatprep.subr.mxu0 0.0
        %1141 = vmatpush1.msra.mxu0 0.0
        %1142 = vmatprep.subr.mxu0 0.0
        %1143 = vmatpush1.msra.mxu0 0.0
        %1144 = vmatprep.subr.mxu0 0.0
        %1145 = vmatpush1.msra.mxu0 0.0
        %1146 = vmatprep.subr.mxu0 0.0
        %1147 = vmatpush1.msra.mxu0 0.0
        %1148 = vmatprep.subr.mxu0 0.0
        %1149 = vmatpush1.msra.mxu0 0.0
        %1150 = vmatprep.subr.mxu0 0.0
        %1151 = vmatpush1.msra.mxu0 0.0
        %1152 = vmatprep.subr.mxu0 0.0
        %1153 = vmatpush1.msra.mxu0 0.0
        %1154 = vmatprep.subr.mxu0 0.0
        %1155 = vmatpush1.msra.mxu0 0.0
        %1156 = vmatprep.subr.mxu0 0.0
        %1157 = vmatpush1.msra.mxu0 0.0
        %1158 = vmatprep.mubr.f32.mxu0 %v1090
        %1159 = vmatmul.mubr.f32.gmra.mrb[0].mxu0 %v1084
        %v1160 = vpop.f32.mrb[0].mxu0
        %v1161 = vadd.f32 0.0, %v1160
        %v1162 = vpop.f32.mrb[0].mxu0
        %1163 = vmatprep.mubr.f32.mxu0 %v1092
        %1164 = vmatmul.mubr.f32.gmra.mrb[0].mxu0 %v1086
        %v1165 = vpop.f32.mrb[0].mxu0
        %v1166 = vadd.f32 0.0, %v1165
        %v1167 = vpop.f32.mrb[0].mxu0
        %1168 = vdwg.mxu0
        %v1169 = vadd.f32 %v1012, %v1161
        %v1170 = vadd.f32 %v1017, %v1166
        %v1171 = vld [vmem:[%s4] sm:$0x1]
        %v1173 = vlaneseq
        %v1174 = vshrl.u32 %v1173, 7
        %v1175 = vsub.s32 0, %v1174
        %v1176 = vrot.slane %v1171, %v1175
        %v1178 = vadd.f32 %v1169, %v1176
        %v1179 = vadd.f32 %v1170, %v1176
        %v1180 = vld [vmem:[%s237] sm:$0xff]
        %v1181 = vld [vmem:[%s237 + $0x8] sm:$0xff]
        %v1182 = vadd.f32 %v1178, %v1180
        %v1183 = vadd.f32 %v1179, %v1181
        %v1184 = vmax.f32 %v1182, 0.0
        %v1185 = vmax.f32 %v1183, 0.0
        %1186 = vst [vmem:[%s271] sm:$0xff] %v1184
        %1187 = vst [vmem:[%s271 + $0x8] sm:$0xff] %v1185
        %s1188 = sand.u32 %s141, 1
        %s1189 = scalar_lea.sflag [#allocation6], %s1188
        %s1190 = sand.u32 %s141, 1
        %s1191 = smul.addr %s1190, 16
        %s1192 = scalar_lea.vmem [#allocation10], %s1191
        // Predicated region
        $region57: #{tpu_custom_call.1} parent=39 // pred_check
          %p1193 = pneg %p151
        $region58: #{tpu_custom_call.1} parent=39 // pred_check_branch
          %1195 = sbr.rel (%p1193) target = $region60
        $region59: #{tpu_custom_call.1} parent=39 // pred_region
          %s1197 = ssub.s32 256, 256
          %1198 = vsyncadd %s1189, %s1197
          %s1199 = smul.addr %s23, 2
          %s1200 = smul.addr %s1199, 128
          %s1201 = scalar_lea.hbm %s5, %s1200
          %s1202 = sshll.u32 %s1192, 4
          %s1203 = int_to_ptr.vmem [resolvable:$true] %s1202
          %1208 = dma.vmem_to_hbm [thread:$0]  %s1203, 256, %s1201, %s1189, 128, 128, 8
        $region60: #{tpu_custom_call.1} parent=39 // pred_fallthru
          _
      $region40: #{tpu_custom_call.1} parent=5 // pred_fallthru
        _
      %p1209 = scmp.le.s32.totalorder 2, %s18
      // Predicated region
      $region61: #{tpu_custom_call.1} parent=5 // pred_check
        %p1210 = pneg %p1209
      $region62: #{tpu_custom_call.1} parent=5 // pred_check_branch
        %1212 = sbr.rel (%p1210) target = $region64
      $region63: #{tpu_custom_call.1} parent=5 // pred_region
        %s1213 = ssub.s32 %s18, 2
        // Predicated region
        $region65: #{tpu_custom_call.1} parent=63 // pred_check
          %p1214 = pneg %p157
        $region66: #{tpu_custom_call.1} parent=63 // pred_check_branch
          %1216 = sbr.rel (%p1214) target = $region68
        $region67: #{tpu_custom_call.1} parent=63 // pred_region
          %s1217 = sand.u32 %s142, 1
          %s1218 = scalar_lea.sflag [#allocation6], %s1217
          %s1219 = sand.u32 %s142, 1
          %s1220 = smul.addr %s1219, 16
          %s1221 = scalar_lea.vmem [#allocation10], %s1220
          %1222 = dma.done %s1218, 256
        $region68: #{tpu_custom_call.1} parent=63 // pred_fallthru
          _
      $region64: #{tpu_custom_call.1} parent=5 // pred_fallthru
        _
    $region6: #{tpu_custom_call.1} parent=1 // loop_footer
      %s22 = sadd.s32 1, %s18
    $region7: #{tpu_custom_call.1} parent=1 // loop_footer_branch
      %17 = sbr.rel target = $region3
    $region8: #{tpu_custom_call.1} parent=1 // loop_exit
      _
    %1223 = vsyncpa [#allocation5], 1
    %s1224 = scalar_lea.sflag [#allocation5], 1
    %1225 = vsyncpa %s1224, 1
    %1226 = vsyncpa [#allocation8], 1
    %1227 = vsyncpa [#allocation6], 1
    %s1228 = scalar_lea.sflag [#allocation6], 1
    %1229 = vsyncpa %s1228, 1

</llo_original>
